<compile_context>
chip_gen: v7x
topology: tpu7x:2x2x1
jax: 0.10.0
libtpu: 0.0.40
codegen_flags: <defaults>
</compile_context>

<pallas_src>
import functools

import jax
import jax.numpy as jnp
from jax import lax
from jax.experimental import pallas as pl
from jax.experimental.pallas import tpu as pltpu


def _direction_attention_kernel(dir_ref, x_ref,
                                wq_ref, bq_ref,     # (3, D) f32, (1, D) f32   (pre-scaled)
                                wkv_ref, bkv_ref,   # (D, 2D) bf16, (1, 2D) f32
                                wo_ref, bo_ref,     # (D, D) bf16, (1, D) f32
                                o_ref,              # (Sq, D) f32
                                *, num_heads):
    D = o_ref.shape[-1]
    hd = D // num_heads
    Sq = dir_ref.shape[0]

    x = x_ref[...]                                   # (S, D)  f32
    d = dir_ref[...]                                 # (Sq, 3) f32

    # ---- Fused full-width K/V projection (one MXU stream, bf16 operands) ----
    kv = jnp.dot(x.astype(jnp.bfloat16), wkv_ref[...],
                 preferred_element_type=jnp.float32) + bkv_ref[...]   # (S, 2D) f32
    k16 = kv[:, :D].astype(jnp.bfloat16)             # (S, D) bf16, lane-dense
    v16 = kv[:, D:].astype(jnp.bfloat16)             # (S, D) bf16, lane-dense

    # ---- Q projection on the VPU -------------------------------------------
    # Contraction depth is only 3, so three broadcast FMAs beat an MXU
    # round-trip.  The 1/sqrt(head_dim) scale is already folded into wq/bq.
    wq = wq_ref[...]                                 # (3, D) f32
    q = (d[:, 0:1] * wq[0:1, :]
         + d[:, 1:2] * wq[1:2, :]
         + d[:, 2:3] * wq[2:3, :]
         + bq_ref[...])                              # (Sq, D) f32, lane-dense
    q16 = q.astype(jnp.bfloat16)

    wo = wo_ref[...]                                 # (D, D) bf16
    out = jnp.zeros((Sq, D), jnp.float32)            # lane-dense f32 accumulator

    # Per-head attention.  Heads are independent; the split is a static lane
    # slice (width hd) applied only to the two contractions that need it.
    # (With hd >= 128 these slices become free tile-aligned views.)
    dn_qkT = (((1,), (1,)), ((), ()))                # contract last dims: q_h . k_h^T
    for h in range(num_heads):                       # static unroll, H is small
        lo = h * hd
        hi = lo + hd
        qh = q16[:, lo:hi]                           # (Sq, hd) bf16
        kh = k16[:, lo:hi]                           # (S,  hd) bf16
        vh = v16[:, lo:hi]                           # (S,  hd) bf16

        s = lax.dot_general(qh, kh, dn_qkT,
                            preferred_element_type=jnp.float32)       # (Sq, S) f32
        m = jnp.max(s, axis=-1, keepdims=True)
        p = jnp.exp(s - m)
        denom = jnp.sum(p, axis=-1, keepdims=True)
        attn = (p * pl.reciprocal(denom, approx=True)                 # EUP, not VALU div
                ).astype(jnp.bfloat16)                                # (Sq, S) bf16

        ctx = jnp.dot(attn, vh, preferred_element_type=jnp.float32)   # (Sq, hd) f32
        # concat_h(ctx_h) @ wo  ==  sum_h ctx_h @ wo[h*hd:(h+1)*hd, :]
        # so the lane-dim concatenate disappears and the accumulator stays
        # full-width (D on the lane axis).
        out = out + jnp.dot(ctx.astype(jnp.bfloat16), wo[lo:hi, :],
                            preferred_element_type=jnp.float32)       # (Sq, D) f32

    o_ref[...] = (out + bo_ref[...]).astype(o_ref.dtype)


def direction_attention(x, direction, params, *, num_heads):
    """x: (B, S, d_model) f32, direction: (B, Sq, 3) f32 -> (B, Sq, d_model) f32."""
    B, S, D = x.shape
    _, Sq, _ = direction.shape
    H = num_heads
    hd = D // H
    scale = 1.0 / float(hd) ** 0.5

    f32, bf16 = jnp.float32, jnp.bfloat16

    # Weight preparation (XLA side, once):
    #  * softmax scale folded into wq / bq,
    #  * K and V projection weights fused into one (D, 2D) matrix,
    #  * MXU-facing weights pre-cast to bf16 (activation accumulation stays f32).
    wq = (params['wq'] * scale).astype(f32)                               # (3, D)
    bq = (params['bq'] * scale).astype(f32)                               # (1, D)
    wkv = jnp.concatenate([params['wk'], params['wv']], axis=1).astype(bf16)   # (D, 2D)
    bkv = jnp.concatenate([params['bk'], params['bv']], axis=1).astype(f32)    # (1, 2D)
    wo = params['wo'].astype(bf16)                                        # (D, D)
    bo = params['bo'].astype(f32)                                         # (1, D)
    consts = (wq, bq, wkv, bkv, wo, bo)

    kernel = functools.partial(_direction_attention_kernel, num_heads=H)

    # Explicit VMEM budget: double-buffered per-batch tiles + weights, with
    # generous headroom, clamped to a safe range for v5e/v6e/v7x.
    const_bytes = sum(int(a.size) * a.dtype.itemsize for a in consts)
    block_bytes = (Sq * 3 + S * D + Sq * D) * 4
    vmem_limit = int(min(128 * 1024 * 1024,
                         max(2 * 1024 * 1024,
                             4 * (2 * block_bytes + 2 * const_bytes))))

    def _weight_spec(a, single_buffer):
        # Full-array block, constant index map: fetched once, reused across the
        # whole grid.  Single-buffer it (no revolving buffers needed for a
        # grid-invariant block) when this Pallas build supports the knob.
        index_map = lambda b: (0, 0)                 # all weights are 2-D
        if single_buffer and hasattr(pl, "Buffered"):
            try:
                return pl.BlockSpec(a.shape, index_map,
                                    pipeline_mode=pl.Buffered(1))
            except TypeError:                        # no pipeline_mode kwarg
                pass
        return pl.BlockSpec(a.shape, index_map)

    def build(single_buffer_weights):
        in_specs = [
            pl.BlockSpec((None, Sq, 3), lambda b: (b, 0, 0)),   # direction
            pl.BlockSpec((None, S, D), lambda b: (b, 0, 0)),    # x
        ] + [_weight_spec(a, single_buffer_weights) for a in consts]
        return pl.pallas_call(
            kernel,
            out_shape=jax.ShapeDtypeStruct((B, Sq, D), jnp.float32),
            grid_spec=pltpu.PrefetchScalarGridSpec(
                num_scalar_prefetch=0,
                grid=(B,),
                in_specs=in_specs,
                out_specs=pl.BlockSpec((None, Sq, D), lambda b: (b, 0, 0)),
            ),
            compiler_params=pltpu.CompilerParams(
                dimension_semantics=("parallel",),
                vmem_limit_bytes=vmem_limit),
        )

    try:
        return build(True)(direction, x, *consts)
    except Exception:
        # Fallback for Pallas builds where pipeline_mode=pl.Buffered(1) is not
        # supported; identical kernel, default (double-buffered) weight blocks.
        return build(False)(direction, x, *consts)


def _reference(x, direction, params, *, num_heads):
    """Pure-JAX f32 reference mirroring the PyTorch forward exactly."""
    B = x.shape[0]
    D = x.shape[-1]
    hd = D // num_heads

    q = direction @ params['wq'] + params['bq']          # (B, Sq, D)
    k = x @ params['wk'] + params['bk']                  # (B, S, D)
    v = x @ params['wv'] + params['bv']

    def split(t):
        return t.reshape(B, -1, num_heads, hd).transpose(0, 2, 1, 3)

    qh, kh, vh = split(q), split(k), split(v)            # (B, H, L, hd)
    scores = jnp.einsum('bhqd,bhkd->bhqk', qh, kh) / jnp.sqrt(jnp.float32(hd))
    attn = jax.nn.softmax(scores, axis=-1)
    out = jnp.einsum('bhqk,bhkd->bhqd', attn, vh)
    out = out.transpose(0, 2, 1, 3).reshape(B, -1, D)
    return out @ params['wo'] + params['bo']


if __name__ == "__main__":
    B, S, Sq = 2, 8, 8
    d_model, num_heads = 32, 4

    key = jax.random.PRNGKey(0)
    keys = jax.random.split(key, 10)

    # Deterministic synthetic parameters (PyTorch Linear weights stored as
    # (in, out) so the math is y = x @ W + b).
    params = {
        'wq': jax.random.normal(keys[0], (3, d_model), jnp.float32) * 0.1,
        'bq': jax.random.normal(keys[1], (1, d_model), jnp.float32) * 0.1,
        'wk': jax.random.normal(keys[2], (d_model, d_model), jnp.float32) * 0.1,
        'bk': jax.random.normal(keys[3], (1, d_model), jnp.float32) * 0.1,
        'wv': jax.random.normal(keys[4], (d_model, d_model), jnp.float32) * 0.1,
        'bv': jax.random.normal(keys[5], (1, d_model), jnp.float32) * 0.1,
        'wo': jax.random.normal(keys[6], (d_model, d_model), jnp.float32) * 0.1,
        'bo': jax.random.normal(keys[7], (1, d_model), jnp.float32) * 0.1,
    }

    x = jax.random.normal(keys[8], (B, S, d_model), jnp.float32)
    direction = jax.random.normal(keys[9], (B, Sq, 3), jnp.float32)

    out = direction_attention(x, direction, params, num_heads=num_heads)
    out = jax.block_until_ready(out)

    ref = _reference(x, direction, params, num_heads=num_heads)
    assert out.shape == (B, Sq, d_model)
    # Tolerance 2e-2: MXU operands are bf16 (f32 accumulation) and the softmax
    # normalisation uses the EUP approximate reciprocal; both trade a few low
    # bits of precision for MXU rate / a free execution slot.
    max_err = jnp.max(jnp.abs(out - ref))
    assert jnp.allclose(out, ref, atol=2e-2, rtol=2e-2), f"max err {max_err}"

    print("KERNEL_OK")
</pallas_src>

<mosaic_0001>
module attributes {stable_mosaic.version = 11 : i64} {
  func.func @_direction_attention_kernel(%arg0: i32, %arg1: memref<1x8x3xf32, #tpu.memory_space<vmem>>, %arg2: memref<1x8x32xf32, #tpu.memory_space<vmem>>, %arg3: memref<3x32xf32, #tpu.memory_space<vmem>>, %arg4: memref<1x32xf32, #tpu.memory_space<vmem>>, %arg5: memref<32x64xbf16, #tpu.memory_space<vmem>>, %arg6: memref<1x64xf32, #tpu.memory_space<vmem>>, %arg7: memref<32x32xbf16, #tpu.memory_space<vmem>>, %arg8: memref<1x32xf32, #tpu.memory_space<vmem>>, %arg9: memref<1x8x32xf32, #tpu.memory_space<vmem>>) attributes {dimension_semantics = [#tpu.dimension_semantics<parallel>], iteration_bounds = array<i64: 2>, scalar_prefetch = 0 : i64, scratch_operands = 0 : i64, tpu.core_type = #tpu.core_type<tc>, window_params = [{transform_indices = @transform_0, window_bounds = array<i64: 1, 8, 3>}, {transform_indices = @transform_1, window_bounds = array<i64: 1, 8, 32>}, {pipeline_mode = #tpu.pipeline_mode<synchronous>, transform_indices = @transform_2, window_bounds = array<i64: 3, 32>}, {pipeline_mode = #tpu.pipeline_mode<synchronous>, transform_indices = @transform_3, window_bounds = array<i64: 1, 32>}, {pipeline_mode = #tpu.pipeline_mode<synchronous>, transform_indices = @transform_4, window_bounds = array<i64: 32, 64>}, {pipeline_mode = #tpu.pipeline_mode<synchronous>, transform_indices = @transform_5, window_bounds = array<i64: 1, 64>}, {pipeline_mode = #tpu.pipeline_mode<synchronous>, transform_indices = @transform_6, window_bounds = array<i64: 32, 32>}, {pipeline_mode = #tpu.pipeline_mode<synchronous>, transform_indices = @transform_7, window_bounds = array<i64: 1, 32>}, {transform_indices = @transform_8, window_bounds = array<i64: 1, 8, 32>}]} {
    %c0 = arith.constant 0 : index
    %c0_0 = arith.constant 0 : index
    %c0_1 = arith.constant 0 : index
    %0 = vector.load %arg2[%c0, %c0_0, %c0_1] : memref<1x8x32xf32, #tpu.memory_space<vmem>>, vector<1x8x32xf32>
    %1 = vector.shape_cast %0 : vector<1x8x32xf32> to vector<8x32xf32>
    %c0_2 = arith.constant 0 : index
    %c0_3 = arith.constant 0 : index
    %c0_4 = arith.constant 0 : index
    %2 = vector.load %arg1[%c0_2, %c0_3, %c0_4] : memref<1x8x3xf32, #tpu.memory_space<vmem>>, vector<1x8x3xf32>
    %3 = vector.shape_cast %2 : vector<1x8x3xf32> to vector<8x3xf32>
    %4 = arith.truncf %1 : vector<8x32xf32> to vector<8x32xbf16>
    %c0_5 = arith.constant 0 : index
    %c0_6 = arith.constant 0 : index
    %5 = vector.load %arg5[%c0_5, %c0_6] : memref<32x64xbf16, #tpu.memory_space<vmem>>, vector<32x64xbf16>
    %cst = arith.constant dense<0.000000e+00> : vector<8x64xf32>
    %6 = tpu.matmul %4, %5, %cst {dimension_numbers = #tpu.dot_dimension_numbers<[1], [0], [0], [1], [0, 0, 1, 1], [], []>} : vector<8x32xbf16>, vector<32x64xbf16>, vector<8x64xf32> -> vector<8x64xf32>
    %c0_7 = arith.constant 0 : index
    %c0_8 = arith.constant 0 : index
    %7 = vector.load %arg6[%c0_7, %c0_8] : memref<1x64xf32, #tpu.memory_space<vmem>>, vector<1x64xf32>
    %8 = vector.broadcast %7 : vector<1x64xf32> to vector<8x64xf32>
    %9 = arith.addf %6, %8 : vector<8x64xf32>
    %10 = vector.extract_strided_slice %9 {offsets = [0, 0], sizes = [8, 32], strides = [1, 1]} : vector<8x64xf32> to vector<8x32xf32>
    %11 = arith.truncf %10 : vector<8x32xf32> to vector<8x32xbf16>
    %12 = vector.extract_strided_slice %9 {offsets = [0, 32], sizes = [8, 32], strides = [1, 1]} : vector<8x64xf32> to vector<8x32xf32>
    %13 = arith.truncf %12 : vector<8x32xf32> to vector<8x32xbf16>
    %c0_9 = arith.constant 0 : index
    %c0_10 = arith.constant 0 : index
    %14 = vector.load %arg3[%c0_9, %c0_10] : memref<3x32xf32, #tpu.memory_space<vmem>>, vector<3x32xf32>
    %15 = vector.extract_strided_slice %3 {offsets = [0, 0], sizes = [8, 1], strides = [1, 1]} : vector<8x3xf32> to vector<8x1xf32>
    %16 = vector.extract_strided_slice %14 {offsets = [0, 0], sizes = [1, 32], strides = [1, 1]} : vector<3x32xf32> to vector<1x32xf32>
    %17 = vector.broadcast %15 : vector<8x1xf32> to vector<8x32xf32>
    %18 = vector.broadcast %16 : vector<1x32xf32> to vector<8x32xf32>
    %19 = arith.mulf %17, %18 : vector<8x32xf32>
    %20 = vector.extract_strided_slice %3 {offsets = [0, 1], sizes = [8, 1], strides = [1, 1]} : vector<8x3xf32> to vector<8x1xf32>
    %21 = vector.extract_strided_slice %14 {offsets = [1, 0], sizes = [1, 32], strides = [1, 1]} : vector<3x32xf32> to vector<1x32xf32>
    %22 = vector.broadcast %20 : vector<8x1xf32> to vector<8x32xf32>
    %23 = vector.broadcast %21 : vector<1x32xf32> to vector<8x32xf32>
    %24 = arith.mulf %22, %23 : vector<8x32xf32>
    %25 = arith.addf %19, %24 : vector<8x32xf32>
    %26 = vector.extract_strided_slice %3 {offsets = [0, 2], sizes = [8, 1], strides = [1, 1]} : vector<8x3xf32> to vector<8x1xf32>
    %27 = vector.extract_strided_slice %14 {offsets = [2, 0], sizes = [1, 32], strides = [1, 1]} : vector<3x32xf32> to vector<1x32xf32>
    %28 = vector.broadcast %26 : vector<8x1xf32> to vector<8x32xf32>
    %29 = vector.broadcast %27 : vector<1x32xf32> to vector<8x32xf32>
    %30 = arith.mulf %28, %29 : vector<8x32xf32>
    %31 = arith.addf %25, %30 : vector<8x32xf32>
    %c0_11 = arith.constant 0 : index
    %c0_12 = arith.constant 0 : index
    %32 = vector.load %arg4[%c0_11, %c0_12] : memref<1x32xf32, #tpu.memory_space<vmem>>, vector<1x32xf32>
    %33 = vector.broadcast %32 : vector<1x32xf32> to vector<8x32xf32>
    %34 = arith.addf %31, %33 : vector<8x32xf32>
    %35 = arith.truncf %34 : vector<8x32xf32> to vector<8x32xbf16>
    %c0_13 = arith.constant 0 : index
    %c0_14 = arith.constant 0 : index
    %36 = vector.load %arg7[%c0_13, %c0_14] : memref<32x32xbf16, #tpu.memory_space<vmem>>, vector<32x32xbf16>
    %cst_15 = arith.constant 0.000000e+00 : f32
    %37 = vector.broadcast %cst_15 : f32 to vector<8x32xf32>
    %38 = vector.extract_strided_slice %35 {offsets = [0, 0], sizes = [8, 8], strides = [1, 1]} : vector<8x32xbf16> to vector<8x8xbf16>
    %39 = vector.extract_strided_slice %11 {offsets = [0, 0], sizes = [8, 8], strides = [1, 1]} : vector<8x32xbf16> to vector<8x8xbf16>
    %40 = vector.extract_strided_slice %13 {offsets = [0, 0], sizes = [8, 8], strides = [1, 1]} : vector<8x32xbf16> to vector<8x8xbf16>
    %cst_16 = arith.constant dense<0.000000e+00> : vector<8x8xf32>
    %41 = tpu.matmul %38, %39, %cst_16 {dimension_numbers = #tpu.dot_dimension_numbers<[1], [1], [0], [0], [0, 0, 1, 0], [], []>} : vector<8x8xbf16>, vector<8x8xbf16>, vector<8x8xf32> -> vector<8x8xf32>
    %cst_17 = arith.constant dense<0xFF800000> : vector<8xf32>
    %42 = vector.multi_reduction <maximumf>, %41, %cst_17 [1] : vector<8x8xf32> to vector<8xf32>
    %43 = vector.shape_cast %42 : vector<8xf32> to vector<8x1xf32>
    %44 = vector.broadcast %43 : vector<8x1xf32> to vector<8x8xf32>
    %45 = arith.subf %41, %44 : vector<8x8xf32>
    %46 = math.exp %45 : vector<8x8xf32>
    %cst_18 = arith.constant dense<0.000000e+00> : vector<8xf32>
    %47 = vector.multi_reduction <add>, %46, %cst_18 [1] : vector<8x8xf32> to vector<8xf32>
    %48 = vector.shape_cast %47 : vector<8xf32> to vector<8x1xf32>
    %49 = tpu.reciprocal %48 {approx = true} : vector<8x1xf32> -> vector<8x1xf32>
    %50 = vector.broadcast %49 : vector<8x1xf32> to vector<8x8xf32>
    %51 = arith.mulf %46, %50 : vector<8x8xf32>
    %52 = arith.truncf %51 : vector<8x8xf32> to vector<8x8xbf16>
    %cst_19 = arith.constant dense<0.000000e+00> : vector<8x8xf32>
    %53 = tpu.matmul %52, %40, %cst_19 {dimension_numbers = #tpu.dot_dimension_numbers<[1], [0], [0], [1], [0, 0, 1, 1], [], []>} : vector<8x8xbf16>, vector<8x8xbf16>, vector<8x8xf32> -> vector<8x8xf32>
    %54 = arith.truncf %53 : vector<8x8xf32> to vector<8x8xbf16>
    %55 = vector.extract_strided_slice %36 {offsets = [0, 0], sizes = [8, 32], strides = [1, 1]} : vector<32x32xbf16> to vector<8x32xbf16>
    %cst_20 = arith.constant dense<0.000000e+00> : vector<8x32xf32>
    %56 = tpu.matmul %54, %55, %cst_20 {dimension_numbers = #tpu.dot_dimension_numbers<[1], [0], [0], [1], [0, 0, 1, 1], [], []>} : vector<8x8xbf16>, vector<8x32xbf16>, vector<8x32xf32> -> vector<8x32xf32>
    %57 = arith.addf %37, %56 : vector<8x32xf32>
    %58 = vector.extract_strided_slice %35 {offsets = [0, 8], sizes = [8, 8], strides = [1, 1]} : vector<8x32xbf16> to vector<8x8xbf16>
    %59 = vector.extract_strided_slice %11 {offsets = [0, 8], sizes = [8, 8], strides = [1, 1]} : vector<8x32xbf16> to vector<8x8xbf16>
    %60 = vector.extract_strided_slice %13 {offsets = [0, 8], sizes = [8, 8], strides = [1, 1]} : vector<8x32xbf16> to vector<8x8xbf16>
    %cst_21 = arith.constant dense<0.000000e+00> : vector<8x8xf32>
    %61 = tpu.matmul %58, %59, %cst_21 {dimension_numbers = #tpu.dot_dimension_numbers<[1], [1], [0], [0], [0, 0, 1, 0], [], []>} : vector<8x8xbf16>, vector<8x8xbf16>, vector<8x8xf32> -> vector<8x8xf32>
    %cst_22 = arith.constant dense<0xFF800000> : vector<8xf32>
    %62 = vector.multi_reduction <maximumf>, %61, %cst_22 [1] : vector<8x8xf32> to vector<8xf32>
    %63 = vector.shape_cast %62 : vector<8xf32> to vector<8x1xf32>
    %64 = vector.broadcast %63 : vector<8x1xf32> to vector<8x8xf32>
    %65 = arith.subf %61, %64 : vector<8x8xf32>
    %66 = math.exp %65 : vector<8x8xf32>
    %cst_23 = arith.constant dense<0.000000e+00> : vector<8xf32>
    %67 = vector.multi_reduction <add>, %66, %cst_23 [1] : vector<8x8xf32> to vector<8xf32>
    %68 = vector.shape_cast %67 : vector<8xf32> to vector<8x1xf32>
    %69 = tpu.reciprocal %68 {approx = true} : vector<8x1xf32> -> vector<8x1xf32>
    %70 = vector.broadcast %69 : vector<8x1xf32> to vector<8x8xf32>
    %71 = arith.mulf %66, %70 : vector<8x8xf32>
    %72 = arith.truncf %71 : vector<8x8xf32> to vector<8x8xbf16>
    %cst_24 = arith.constant dense<0.000000e+00> : vector<8x8xf32>
    %73 = tpu.matmul %72, %60, %cst_24 {dimension_numbers = #tpu.dot_dimension_numbers<[1], [0], [0], [1], [0, 0, 1, 1], [], []>} : vector<8x8xbf16>, vector<8x8xbf16>, vector<8x8xf32> -> vector<8x8xf32>
    %74 = arith.truncf %73 : vector<8x8xf32> to vector<8x8xbf16>
    %75 = vector.extract_strided_slice %36 {offsets = [8, 0], sizes = [8, 32], strides = [1, 1]} : vector<32x32xbf16> to vector<8x32xbf16>
    %cst_25 = arith.constant dense<0.000000e+00> : vector<8x32xf32>
    %76 = tpu.matmul %74, %75, %cst_25 {dimension_numbers = #tpu.dot_dimension_numbers<[1], [0], [0], [1], [0, 0, 1, 1], [], []>} : vector<8x8xbf16>, vector<8x32xbf16>, vector<8x32xf32> -> vector<8x32xf32>
    %77 = arith.addf %57, %76 : vector<8x32xf32>
    %78 = vector.extract_strided_slice %35 {offsets = [0, 16], sizes = [8, 8], strides = [1, 1]} : vector<8x32xbf16> to vector<8x8xbf16>
    %79 = vector.extract_strided_slice %11 {offsets = [0, 16], sizes = [8, 8], strides = [1, 1]} : vector<8x32xbf16> to vector<8x8xbf16>
    %80 = vector.extract_strided_slice %13 {offsets = [0, 16], sizes = [8, 8], strides = [1, 1]} : vector<8x32xbf16> to vector<8x8xbf16>
    %cst_26 = arith.constant dense<0.000000e+00> : vector<8x8xf32>
    %81 = tpu.matmul %78, %79, %cst_26 {dimension_numbers = #tpu.dot_dimension_numbers<[1], [1], [0], [0], [0, 0, 1, 0], [], []>} : vector<8x8xbf16>, vector<8x8xbf16>, vector<8x8xf32> -> vector<8x8xf32>
    %cst_27 = arith.constant dense<0xFF800000> : vector<8xf32>
    %82 = vector.multi_reduction <maximumf>, %81, %cst_27 [1] : vector<8x8xf32> to vector<8xf32>
    %83 = vector.shape_cast %82 : vector<8xf32> to vector<8x1xf32>
    %84 = vector.broadcast %83 : vector<8x1xf32> to vector<8x8xf32>
    %85 = arith.subf %81, %84 : vector<8x8xf32>
    %86 = math.exp %85 : vector<8x8xf32>
    %cst_28 = arith.constant dense<0.000000e+00> : vector<8xf32>
    %87 = vector.multi_reduction <add>, %86, %cst_28 [1] : vector<8x8xf32> to vector<8xf32>
    %88 = vector.shape_cast %87 : vector<8xf32> to vector<8x1xf32>
    %89 = tpu.reciprocal %88 {approx = true} : vector<8x1xf32> -> vector<8x1xf32>
    %90 = vector.broadcast %89 : vector<8x1xf32> to vector<8x8xf32>
    %91 = arith.mulf %86, %90 : vector<8x8xf32>
    %92 = arith.truncf %91 : vector<8x8xf32> to vector<8x8xbf16>
    %cst_29 = arith.constant dense<0.000000e+00> : vector<8x8xf32>
    %93 = tpu.matmul %92, %80, %cst_29 {dimension_numbers = #tpu.dot_dimension_numbers<[1], [0], [0], [1], [0, 0, 1, 1], [], []>} : vector<8x8xbf16>, vector<8x8xbf16>, vector<8x8xf32> -> vector<8x8xf32>
    %94 = arith.truncf %93 : vector<8x8xf32> to vector<8x8xbf16>
    %95 = vector.extract_strided_slice %36 {offsets = [16, 0], sizes = [8, 32], strides = [1, 1]} : vector<32x32xbf16> to vector<8x32xbf16>
    %cst_30 = arith.constant dense<0.000000e+00> : vector<8x32xf32>
    %96 = tpu.matmul %94, %95, %cst_30 {dimension_numbers = #tpu.dot_dimension_numbers<[1], [0], [0], [1], [0, 0, 1, 1], [], []>} : vector<8x8xbf16>, vector<8x32xbf16>, vector<8x32xf32> -> vector<8x32xf32>
    %97 = arith.addf %77, %96 : vector<8x32xf32>
    %98 = vector.extract_strided_slice %35 {offsets = [0, 24], sizes = [8, 8], strides = [1, 1]} : vector<8x32xbf16> to vector<8x8xbf16>
    %99 = vector.extract_strided_slice %11 {offsets = [0, 24], sizes = [8, 8], strides = [1, 1]} : vector<8x32xbf16> to vector<8x8xbf16>
    %100 = vector.extract_strided_slice %13 {offsets = [0, 24], sizes = [8, 8], strides = [1, 1]} : vector<8x32xbf16> to vector<8x8xbf16>
    %cst_31 = arith.constant dense<0.000000e+00> : vector<8x8xf32>
    %101 = tpu.matmul %98, %99, %cst_31 {dimension_numbers = #tpu.dot_dimension_numbers<[1], [1], [0], [0], [0, 0, 1, 0], [], []>} : vector<8x8xbf16>, vector<8x8xbf16>, vector<8x8xf32> -> vector<8x8xf32>
    %cst_32 = arith.constant dense<0xFF800000> : vector<8xf32>
    %102 = vector.multi_reduction <maximumf>, %101, %cst_32 [1] : vector<8x8xf32> to vector<8xf32>
    %103 = vector.shape_cast %102 : vector<8xf32> to vector<8x1xf32>
    %104 = vector.broadcast %103 : vector<8x1xf32> to vector<8x8xf32>
    %105 = arith.subf %101, %104 : vector<8x8xf32>
    %106 = math.exp %105 : vector<8x8xf32>
    %cst_33 = arith.constant dense<0.000000e+00> : vector<8xf32>
    %107 = vector.multi_reduction <add>, %106, %cst_33 [1] : vector<8x8xf32> to vector<8xf32>
    %108 = vector.shape_cast %107 : vector<8xf32> to vector<8x1xf32>
    %109 = tpu.reciprocal %108 {approx = true} : vector<8x1xf32> -> vector<8x1xf32>
    %110 = vector.broadcast %109 : vector<8x1xf32> to vector<8x8xf32>
    %111 = arith.mulf %106, %110 : vector<8x8xf32>
    %112 = arith.truncf %111 : vector<8x8xf32> to vector<8x8xbf16>
    %cst_34 = arith.constant dense<0.000000e+00> : vector<8x8xf32>
    %113 = tpu.matmul %112, %100, %cst_34 {dimension_numbers = #tpu.dot_dimension_numbers<[1], [0], [0], [1], [0, 0, 1, 1], [], []>} : vector<8x8xbf16>, vector<8x8xbf16>, vector<8x8xf32> -> vector<8x8xf32>
    %114 = arith.truncf %113 : vector<8x8xf32> to vector<8x8xbf16>
    %115 = vector.extract_strided_slice %36 {offsets = [24, 0], sizes = [8, 32], strides = [1, 1]} : vector<32x32xbf16> to vector<8x32xbf16>
    %cst_35 = arith.constant dense<0.000000e+00> : vector<8x32xf32>
    %116 = tpu.matmul %114, %115, %cst_35 {dimension_numbers = #tpu.dot_dimension_numbers<[1], [0], [0], [1], [0, 0, 1, 1], [], []>} : vector<8x8xbf16>, vector<8x32xbf16>, vector<8x32xf32> -> vector<8x32xf32>
    %117 = arith.addf %97, %116 : vector<8x32xf32>
    %c0_36 = arith.constant 0 : index
    %c0_37 = arith.constant 0 : index
    %118 = vector.load %arg8[%c0_36, %c0_37] : memref<1x32xf32, #tpu.memory_space<vmem>>, vector<1x32xf32>
    %119 = vector.broadcast %118 : vector<1x32xf32> to vector<8x32xf32>
    %120 = arith.addf %117, %119 : vector<8x32xf32>
    %c0_38 = arith.constant 0 : index
    %c0_39 = arith.constant 0 : index
    %c0_40 = arith.constant 0 : index
    %121 = vector.load %arg9[%c0_38, %c0_39, %c0_40] : memref<1x8x32xf32, #tpu.memory_space<vmem>>, vector<1x8x32xf32>
    %122 = vector.shape_cast %121 : vector<1x8x32xf32> to vector<8x32xf32>
    %123 = vector.shape_cast %120 : vector<8x32xf32> to vector<1x8x32xf32>
    tpu.vector_store %arg9[%c0_38, %c0_39, %c0_40], %123 {strides = array<i32>} : memref<1x8x32xf32, #tpu.memory_space<vmem>>, vector<1x8x32xf32>,
    return
  }
  func.func @transform_0(%arg0: i32) -> (i32, i32, i32) {
    %c0_i32 = arith.constant 0 : i32
    %c0_i32_0 = arith.constant 0 : i32
    %c0_i32_1 = arith.constant 0 : i32
    return %arg0, %c0_i32, %c0_i32_0 : i32, i32, i32
  }
  func.func @transform_1(%arg0: i32) -> (i32, i32, i32) {
    %c0_i32 = arith.constant 0 : i32
    %c0_i32_0 = arith.constant 0 : i32
    %c0_i32_1 = arith.constant 0 : i32
    return %arg0, %c0_i32, %c0_i32_0 : i32, i32, i32
  }
  func.func @transform_2(%arg0: i32) -> (i32, i32) {
    %c0_i32 = arith.constant 0 : i32
    %c0_i32_0 = arith.constant 0 : i32
    %c0_i32_1 = arith.constant 0 : i32
    return %c0_i32, %c0_i32_0 : i32, i32
  }
  func.func @transform_3(%arg0: i32) -> (i32, i32) {
    %c0_i32 = arith.constant 0 : i32
    %c0_i32_0 = arith.constant 0 : i32
    %c0_i32_1 = arith.constant 0 : i32
    return %c0_i32, %c0_i32_0 : i32, i32
  }
  func.func @transform_4(%arg0: i32) -> (i32, i32) {
    %c0_i32 = arith.constant 0 : i32
    %c0_i32_0 = arith.constant 0 : i32
    %c0_i32_1 = arith.constant 0 : i32
    return %c0_i32, %c0_i32_0 : i32, i32
  }
  func.func @transform_5(%arg0: i32) -> (i32, i32) {
    %c0_i32 = arith.constant 0 : i32
    %c0_i32_0 = arith.constant 0 : i32
    %c0_i32_1 = arith.constant 0 : i32
    return %c0_i32, %c0_i32_0 : i32, i32
  }
  func.func @transform_6(%arg0: i32) -> (i32, i32) {
    %c0_i32 = arith.constant 0 : i32
    %c0_i32_0 = arith.constant 0 : i32
    %c0_i32_1 = arith.constant 0 : i32
    return %c0_i32, %c0_i32_0 : i32, i32
  }
  func.func @transform_7(%arg0: i32) -> (i32, i32) {
    %c0_i32 = arith.constant 0 : i32
    %c0_i32_0 = arith.constant 0 : i32
    %c0_i32_1 = arith.constant 0 : i32
    return %c0_i32, %c0_i32_0 : i32, i32
  }
  func.func @transform_8(%arg0: i32) -> (i32, i32, i32) {
    %c0_i32 = arith.constant 0 : i32
    %c0_i32_0 = arith.constant 0 : i32
    %c0_i32_1 = arith.constant 0 : i32
    return %arg0, %c0_i32, %c0_i32_0 : i32, i32, i32
  }
}

module attributes {stable_mosaic.version = 11 : i64} {
  func.func @_direction_attention_kernel(%arg0: i32, %arg1: memref<1x8x3xf32, #tpu.memory_space<vmem>>, %arg2: memref<1x8x32xf32, #tpu.memory_space<vmem>>, %arg3: memref<3x32xf32, #tpu.memory_space<vmem>>, %arg4: memref<1x32xf32, #tpu.memory_space<vmem>>, %arg5: memref<32x64xbf16, #tpu.memory_space<vmem>>, %arg6: memref<1x64xf32, #tpu.memory_space<vmem>>, %arg7: memref<32x32xbf16, #tpu.memory_space<vmem>>, %arg8: memref<1x32xf32, #tpu.memory_space<vmem>>, %arg9: memref<1x8x32xf32, #tpu.memory_space<vmem>>) attributes {dimension_semantics = [#tpu.dimension_semantics<parallel>], iteration_bounds = array<i64: 2>, scalar_prefetch = 0 : i64, scratch_operands = 0 : i64, tpu.core_type = #tpu.core_type<tc>, window_params = [{transform_indices = @transform_0, window_bounds = array<i64: 1, 8, 3>}, {transform_indices = @transform_1, window_bounds = array<i64: 1, 8, 32>}, {pipeline_mode = #tpu.pipeline_mode<synchronous>, transform_indices = @transform_2, window_bounds = array<i64: 3, 32>}, {pipeline_mode = #tpu.pipeline_mode<synchronous>, transform_indices = @transform_3, window_bounds = array<i64: 1, 32>}, {pipeline_mode = #tpu.pipeline_mode<synchronous>, transform_indices = @transform_4, window_bounds = array<i64: 32, 64>}, {pipeline_mode = #tpu.pipeline_mode<synchronous>, transform_indices = @transform_5, window_bounds = array<i64: 1, 64>}, {pipeline_mode = #tpu.pipeline_mode<synchronous>, transform_indices = @transform_6, window_bounds = array<i64: 32, 32>}, {pipeline_mode = #tpu.pipeline_mode<synchronous>, transform_indices = @transform_7, window_bounds = array<i64: 1, 32>}, {transform_indices = @transform_8, window_bounds = array<i64: 1, 8, 32>}]} {
    %c0 = arith.constant 0 : index
    %c0_0 = arith.constant 0 : index
    %c0_1 = arith.constant 0 : index
    %0 = vector.load %arg2[%c0, %c0_0, %c0_1] : memref<1x8x32xf32, #tpu.memory_space<vmem>>, vector<1x8x32xf32>
    %1 = vector.shape_cast %0 : vector<1x8x32xf32> to vector<8x32xf32>
    %c0_2 = arith.constant 0 : index
    %c0_3 = arith.constant 0 : index
    %c0_4 = arith.constant 0 : index
    %2 = vector.load %arg1[%c0_2, %c0_3, %c0_4] : memref<1x8x3xf32, #tpu.memory_space<vmem>>, vector<1x8x3xf32>
    %3 = vector.shape_cast %2 : vector<1x8x3xf32> to vector<8x3xf32>
    %4 = arith.truncf %1 : vector<8x32xf32> to vector<8x32xbf16>
    %c0_5 = arith.constant 0 : index
    %c0_6 = arith.constant 0 : index
    %5 = vector.load %arg5[%c0_5, %c0_6] : memref<32x64xbf16, #tpu.memory_space<vmem>>, vector<32x64xbf16>
    %cst = arith.constant dense<0.000000e+00> : vector<8x64xf32>
    %6 = tpu.matmul %4, %5, %cst {dimension_numbers = #tpu.dot_dimension_numbers<[1], [0], [0], [1], [0, 0, 1, 1], [], []>} : vector<8x32xbf16>, vector<32x64xbf16>, vector<8x64xf32> -> vector<8x64xf32>
    %c0_7 = arith.constant 0 : index
    %c0_8 = arith.constant 0 : index
    %7 = vector.load %arg6[%c0_7, %c0_8] : memref<1x64xf32, #tpu.memory_space<vmem>>, vector<1x64xf32>
    %8 = vector.broadcast %7 : vector<1x64xf32> to vector<8x64xf32>
    %9 = arith.addf %6, %8 : vector<8x64xf32>
    %10 = vector.extract_strided_slice %9 {offsets = [0, 0], sizes = [8, 32], strides = [1, 1]} : vector<8x64xf32> to vector<8x32xf32>
    %11 = arith.truncf %10 : vector<8x32xf32> to vector<8x32xbf16>
    %12 = vector.extract_strided_slice %9 {offsets = [0, 32], sizes = [8, 32], strides = [1, 1]} : vector<8x64xf32> to vector<8x32xf32>
    %13 = arith.truncf %12 : vector<8x32xf32> to vector<8x32xbf16>
    %c0_9 = arith.constant 0 : index
    %c0_10 = arith.constant 0 : index
    %14 = vector.load %arg3[%c0_9, %c0_10] : memref<3x32xf32, #tpu.memory_space<vmem>>, vector<3x32xf32>
    %15 = vector.extract_strided_slice %3 {offsets = [0, 0], sizes = [8, 1], strides = [1, 1]} : vector<8x3xf32> to vector<8x1xf32>
    %16 = vector.extract_strided_slice %14 {offsets = [0, 0], sizes = [1, 32], strides = [1, 1]} : vector<3x32xf32> to vector<1x32xf32>
    %17 = vector.broadcast %15 : vector<8x1xf32> to vector<8x32xf32>
    %18 = vector.broadcast %16 : vector<1x32xf32> to vector<8x32xf32>
    %19 = arith.mulf %17, %18 : vector<8x32xf32>
    %20 = vector.extract_strided_slice %3 {offsets = [0, 1], sizes = [8, 1], strides = [1, 1]} : vector<8x3xf32> to vector<8x1xf32>
    %21 = vector.extract_strided_slice %14 {offsets = [1, 0], sizes = [1, 32], strides = [1, 1]} : vector<3x32xf32> to vector<1x32xf32>
    %22 = vector.broadcast %20 : vector<8x1xf32> to vector<8x32xf32>
    %23 = vector.broadcast %21 : vector<1x32xf32> to vector<8x32xf32>
    %24 = arith.mulf %22, %23 : vector<8x32xf32>
    %25 = arith.addf %19, %24 : vector<8x32xf32>
    %26 = vector.extract_strided_slice %3 {offsets = [0, 2], sizes = [8, 1], strides = [1, 1]} : vector<8x3xf32> to vector<8x1xf32>
    %27 = vector.extract_strided_slice %14 {offsets = [2, 0], sizes = [1, 32], strides = [1, 1]} : vector<3x32xf32> to vector<1x32xf32>
    %28 = vector.broadcast %26 : vector<8x1xf32> to vector<8x32xf32>
    %29 = vector.broadcast %27 : vector<1x32xf32> to vector<8x32xf32>
    %30 = arith.mulf %28, %29 : vector<8x32xf32>
    %31 = arith.addf %25, %30 : vector<8x32xf32>
    %c0_11 = arith.constant 0 : index
    %c0_12 = arith.constant 0 : index
    %32 = vector.load %arg4[%c0_11, %c0_12] : memref<1x32xf32, #tpu.memory_space<vmem>>, vector<1x32xf32>
    %33 = vector.broadcast %32 : vector<1x32xf32> to vector<8x32xf32>
    %34 = arith.addf %31, %33 : vector<8x32xf32>
    %35 = arith.truncf %34 : vector<8x32xf32> to vector<8x32xbf16>
    %c0_13 = arith.constant 0 : index
    %c0_14 = arith.constant 0 : index
    %36 = vector.load %arg7[%c0_13, %c0_14] : memref<32x32xbf16, #tpu.memory_space<vmem>>, vector<32x32xbf16>
    %cst_15 = arith.constant 0.000000e+00 : f32
    %37 = vector.broadcast %cst_15 : f32 to vector<8x32xf32>
    %38 = vector.extract_strided_slice %35 {offsets = [0, 0], sizes = [8, 8], strides = [1, 1]} : vector<8x32xbf16> to vector<8x8xbf16>
    %39 = vector.extract_strided_slice %11 {offsets = [0, 0], sizes = [8, 8], strides = [1, 1]} : vector<8x32xbf16> to vector<8x8xbf16>
    %40 = vector.extract_strided_slice %13 {offsets = [0, 0], sizes = [8, 8], strides = [1, 1]} : vector<8x32xbf16> to vector<8x8xbf16>
    %cst_16 = arith.constant dense<0.000000e+00> : vector<8x8xf32>
    %41 = tpu.matmul %38, %39, %cst_16 {dimension_numbers = #tpu.dot_dimension_numbers<[1], [1], [0], [0], [0, 0, 1, 0], [], []>} : vector<8x8xbf16>, vector<8x8xbf16>, vector<8x8xf32> -> vector<8x8xf32>
    %cst_17 = arith.constant dense<0xFF800000> : vector<8xf32>
    %42 = vector.multi_reduction <maximumf>, %41, %cst_17 [1] : vector<8x8xf32> to vector<8xf32>
    %43 = vector.shape_cast %42 : vector<8xf32> to vector<8x1xf32>
    %44 = vector.broadcast %43 : vector<8x1xf32> to vector<8x8xf32>
    %45 = arith.subf %41, %44 : vector<8x8xf32>
    %46 = math.exp %45 : vector<8x8xf32>
    %cst_18 = arith.constant dense<0.000000e+00> : vector<8xf32>
    %47 = vector.multi_reduction <add>, %46, %cst_18 [1] : vector<8x8xf32> to vector<8xf32>
    %48 = vector.shape_cast %47 : vector<8xf32> to vector<8x1xf32>
    %49 = tpu.reciprocal %48 {approx = true} : vector<8x1xf32> -> vector<8x1xf32>
    %50 = vector.broadcast %49 : vector<8x1xf32> to vector<8x8xf32>
    %51 = arith.mulf %46, %50 : vector<8x8xf32>
    %52 = arith.truncf %51 : vector<8x8xf32> to vector<8x8xbf16>
    %cst_19 = arith.constant dense<0.000000e+00> : vector<8x8xf32>
    %53 = tpu.matmul %52, %40, %cst_19 {dimension_numbers = #tpu.dot_dimension_numbers<[1], [0], [0], [1], [0, 0, 1, 1], [], []>} : vector<8x8xbf16>, vector<8x8xbf16>, vector<8x8xf32> -> vector<8x8xf32>
    %54 = arith.truncf %53 : vector<8x8xf32> to vector<8x8xbf16>
    %55 = vector.extract_strided_slice %36 {offsets = [0, 0], sizes = [8, 32], strides = [1, 1]} : vector<32x32xbf16> to vector<8x32xbf16>
    %cst_20 = arith.constant dense<0.000000e+00> : vector<8x32xf32>
    %56 = tpu.matmul %54, %55, %cst_20 {dimension_numbers = #tpu.dot_dimension_numbers<[1], [0], [0], [1], [0, 0, 1, 1], [], []>} : vector<8x8xbf16>, vector<8x32xbf16>, vector<8x32xf32> -> vector<8x32xf32>
    %57 = arith.addf %37, %56 : vector<8x32xf32>
    %58 = vector.extract_strided_slice %35 {offsets = [0, 8], sizes = [8, 8], strides = [1, 1]} : vector<8x32xbf16> to vector<8x8xbf16>
    %59 = vector.extract_strided_slice %11 {offsets = [0, 8], sizes = [8, 8], strides = [1, 1]} : vector<8x32xbf16> to vector<8x8xbf16>
    %60 = vector.extract_strided_slice %13 {offsets = [0, 8], sizes = [8, 8], strides = [1, 1]} : vector<8x32xbf16> to vector<8x8xbf16>
    %cst_21 = arith.constant dense<0.000000e+00> : vector<8x8xf32>
    %61 = tpu.matmul %58, %59, %cst_21 {dimension_numbers = #tpu.dot_dimension_numbers<[1], [1], [0], [0], [0, 0, 1, 0], [], []>} : vector<8x8xbf16>, vector<8x8xbf16>, vector<8x8xf32> -> vector<8x8xf32>
    %cst_22 = arith.constant dense<0xFF800000> : vector<8xf32>
    %62 = vector.multi_reduction <maximumf>, %61, %cst_22 [1] : vector<8x8xf32> to vector<8xf32>
    %63 = vector.shape_cast %62 : vector<8xf32> to vector<8x1xf32>
    %64 = vector.broadcast %63 : vector<8x1xf32> to vector<8x8xf32>
    %65 = arith.subf %61, %64 : vector<8x8xf32>
    %66 = math.exp %65 : vector<8x8xf32>
    %cst_23 = arith.constant dense<0.000000e+00> : vector<8xf32>
    %67 = vector.multi_reduction <add>, %66, %cst_23 [1] : vector<8x8xf32> to vector<8xf32>
    %68 = vector.shape_cast %67 : vector<8xf32> to vector<8x1xf32>
    %69 = tpu.reciprocal %68 {approx = true} : vector<8x1xf32> -> vector<8x1xf32>
    %70 = vector.broadcast %69 : vector<8x1xf32> to vector<8x8xf32>
    %71 = arith.mulf %66, %70 : vector<8x8xf32>
    %72 = arith.truncf %71 : vector<8x8xf32> to vector<8x8xbf16>
    %cst_24 = arith.constant dense<0.000000e+00> : vector<8x8xf32>
    %73 = tpu.matmul %72, %60, %cst_24 {dimension_numbers = #tpu.dot_dimension_numbers<[1], [0], [0], [1], [0, 0, 1, 1], [], []>} : vector<8x8xbf16>, vector<8x8xbf16>, vector<8x8xf32> -> vector<8x8xf32>
    %74 = arith.truncf %73 : vector<8x8xf32> to vector<8x8xbf16>
    %75 = vector.extract_strided_slice %36 {offsets = [8, 0], sizes = [8, 32], strides = [1, 1]} : vector<32x32xbf16> to vector<8x32xbf16>
    %cst_25 = arith.constant dense<0.000000e+00> : vector<8x32xf32>
    %76 = tpu.matmul %74, %75, %cst_25 {dimension_numbers = #tpu.dot_dimension_numbers<[1], [0], [0], [1], [0, 0, 1, 1], [], []>} : vector<8x8xbf16>, vector<8x32xbf16>, vector<8x32xf32> -> vector<8x32xf32>
    %77 = arith.addf %57, %76 : vector<8x32xf32>
    %78 = vector.extract_strided_slice %35 {offsets = [0, 16], sizes = [8, 8], strides = [1, 1]} : vector<8x32xbf16> to vector<8x8xbf16>
    %79 = vector.extract_strided_slice %11 {offsets = [0, 16], sizes = [8, 8], strides = [1, 1]} : vector<8x32xbf16> to vector<8x8xbf16>
    %80 = vector.extract_strided_slice %13 {offsets = [0, 16], sizes = [8, 8], strides = [1, 1]} : vector<8x32xbf16> to vector<8x8xbf16>
    %cst_26 = arith.constant dense<0.000000e+00> : vector<8x8xf32>
    %81 = tpu.matmul %78, %79, %cst_26 {dimension_numbers = #tpu.dot_dimension_numbers<[1], [1], [0], [0], [0, 0, 1, 0], [], []>} : vector<8x8xbf16>, vector<8x8xbf16>, vector<8x8xf32> -> vector<8x8xf32>
    %cst_27 = arith.constant dense<0xFF800000> : vector<8xf32>
    %82 = vector.multi_reduction <maximumf>, %81, %cst_27 [1] : vector<8x8xf32> to vector<8xf32>
    %83 = vector.shape_cast %82 : vector<8xf32> to vector<8x1xf32>
    %84 = vector.broadcast %83 : vector<8x1xf32> to vector<8x8xf32>
    %85 = arith.subf %81, %84 : vector<8x8xf32>
    %86 = math.exp %85 : vector<8x8xf32>
    %cst_28 = arith.constant dense<0.000000e+00> : vector<8xf32>
    %87 = vector.multi_reduction <add>, %86, %cst_28 [1] : vector<8x8xf32> to vector<8xf32>
    %88 = vector.shape_cast %87 : vector<8xf32> to vector<8x1xf32>
    %89 = tpu.reciprocal %88 {approx = true} : vector<8x1xf32> -> vector<8x1xf32>
    %90 = vector.broadcast %89 : vector<8x1xf32> to vector<8x8xf32>
    %91 = arith.mulf %86, %90 : vector<8x8xf32>
    %92 = arith.truncf %91 : vector<8x8xf32> to vector<8x8xbf16>
    %cst_29 = arith.constant dense<0.000000e+00> : vector<8x8xf32>
    %93 = tpu.matmul %92, %80, %cst_29 {dimension_numbers = #tpu.dot_dimension_numbers<[1], [0], [0], [1], [0, 0, 1, 1], [], []>} : vector<8x8xbf16>, vector<8x8xbf16>, vector<8x8xf32> -> vector<8x8xf32>
    %94 = arith.truncf %93 : vector<8x8xf32> to vector<8x8xbf16>
    %95 = vector.extract_strided_slice %36 {offsets = [16, 0], sizes = [8, 32], strides = [1, 1]} : vector<32x32xbf16> to vector<8x32xbf16>
    %cst_30 = arith.constant dense<0.000000e+00> : vector<8x32xf32>
    %96 = tpu.matmul %94, %95, %cst_30 {dimension_numbers = #tpu.dot_dimension_numbers<[1], [0], [0], [1], [0, 0, 1, 1], [], []>} : vector<8x8xbf16>, vector<8x32xbf16>, vector<8x32xf32> -> vector<8x32xf32>
    %97 = arith.addf %77, %96 : vector<8x32xf32>
    %98 = vector.extract_strided_slice %35 {offsets = [0, 24], sizes = [8, 8], strides = [1, 1]} : vector<8x32xbf16> to vector<8x8xbf16>
    %99 = vector.extract_strided_slice %11 {offsets = [0, 24], sizes = [8, 8], strides = [1, 1]} : vector<8x32xbf16> to vector<8x8xbf16>
    %100 = vector.extract_strided_slice %13 {offsets = [0, 24], sizes = [8, 8], strides = [1, 1]} : vector<8x32xbf16> to vector<8x8xbf16>
    %cst_31 = arith.constant dense<0.000000e+00> : vector<8x8xf32>
    %101 = tpu.matmul %98, %99, %cst_31 {dimension_numbers = #tpu.dot_dimension_numbers<[1], [1], [0], [0], [0, 0, 1, 0], [], []>} : vector<8x8xbf16>, vector<8x8xbf16>, vector<8x8xf32> -> vector<8x8xf32>
    %cst_32 = arith.constant dense<0xFF800000> : vector<8xf32>
    %102 = vector.multi_reduction <maximumf>, %101, %cst_32 [1] : vector<8x8xf32> to vector<8xf32>
    %103 = vector.shape_cast %102 : vector<8xf32> to vector<8x1xf32>
    %104 = vector.broadcast %103 : vector<8x1xf32> to vector<8x8xf32>
    %105 = arith.subf %101, %104 : vector<8x8xf32>
    %106 = math.exp %105 : vector<8x8xf32>
    %cst_33 = arith.constant dense<0.000000e+00> : vector<8xf32>
    %107 = vector.multi_reduction <add>, %106, %cst_33 [1] : vector<8x8xf32> to vector<8xf32>
    %108 = vector.shape_cast %107 : vector<8xf32> to vector<8x1xf32>
    %109 = tpu.reciprocal %108 {approx = true} : vector<8x1xf32> -> vector<8x1xf32>
    %110 = vector.broadcast %109 : vector<8x1xf32> to vector<8x8xf32>
    %111 = arith.mulf %106, %110 : vector<8x8xf32>
    %112 = arith.truncf %111 : vector<8x8xf32> to vector<8x8xbf16>
    %cst_34 = arith.constant dense<0.000000e+00> : vector<8x8xf32>
    %113 = tpu.matmul %112, %100, %cst_34 {dimension_numbers = #tpu.dot_dimension_numbers<[1], [0], [0], [1], [0, 0, 1, 1], [], []>} : vector<8x8xbf16>, vector<8x8xbf16>, vector<8x8xf32> -> vector<8x8xf32>
    %114 = arith.truncf %113 : vector<8x8xf32> to vector<8x8xbf16>
    %115 = vector.extract_strided_slice %36 {offsets = [24, 0], sizes = [8, 32], strides = [1, 1]} : vector<32x32xbf16> to vector<8x32xbf16>
    %cst_35 = arith.constant dense<0.000000e+00> : vector<8x32xf32>
    %116 = tpu.matmul %114, %115, %cst_35 {dimension_numbers = #tpu.dot_dimension_numbers<[1], [0], [0], [1], [0, 0, 1, 1], [], []>} : vector<8x8xbf16>, vector<8x32xbf16>, vector<8x32xf32> -> vector<8x32xf32>
    %117 = arith.addf %97, %116 : vector<8x32xf32>
    %c0_36 = arith.constant 0 : index
    %c0_37 = arith.constant 0 : index
    %118 = vector.load %arg8[%c0_36, %c0_37] : memref<1x32xf32, #tpu.memory_space<vmem>>, vector<1x32xf32>
    %119 = vector.broadcast %118 : vector<1x32xf32> to vector<8x32xf32>
    %120 = arith.addf %117, %119 : vector<8x32xf32>
    %c0_38 = arith.constant 0 : index
    %c0_39 = arith.constant 0 : index
    %c0_40 = arith.constant 0 : index
    %121 = vector.load %arg9[%c0_38, %c0_39, %c0_40] : memref<1x8x32xf32, #tpu.memory_space<vmem>>, vector<1x8x32xf32>
    %122 = vector.shape_cast %121 : vector<1x8x32xf32> to vector<8x32xf32>
    %123 = vector.shape_cast %120 : vector<8x32xf32> to vector<1x8x32xf32>
    tpu.vector_store %arg9[%c0_38, %c0_39, %c0_40], %123 {strides = array<i32>} : memref<1x8x32xf32, #tpu.memory_space<vmem>>, vector<1x8x32xf32>,
    return
  }
  func.func @transform_0(%arg0: i32) -> (i32, i32, i32) {
    %c0_i32 = arith.constant 0 : i32
    %c0_i32_0 = arith.constant 0 : i32
    %c0_i32_1 = arith.constant 0 : i32
    return %arg0, %c0_i32, %c0_i32_0 : i32, i32, i32
  }
  func.func @transform_1(%arg0: i32) -> (i32, i32, i32) {
    %c0_i32 = arith.constant 0 : i32
    %c0_i32_0 = arith.constant 0 : i32
    %c0_i32_1 = arith.constant 0 : i32
    return %arg0, %c0_i32, %c0_i32_0 : i32, i32, i32
  }
  func.func @transform_2(%arg0: i32) -> (i32, i32) {
    %c0_i32 = arith.constant 0 : i32
    %c0_i32_0 = arith.constant 0 : i32
    %c0_i32_1 = arith.constant 0 : i32
    return %c0_i32, %c0_i32_0 : i32, i32
  }
  func.func @transform_3(%arg0: i32) -> (i32, i32) {
    %c0_i32 = arith.constant 0 : i32
    %c0_i32_0 = arith.constant 0 : i32
    %c0_i32_1 = arith.constant 0 : i32
    return %c0_i32, %c0_i32_0 : i32, i32
  }
  func.func @transform_4(%arg0: i32) -> (i32, i32) {
    %c0_i32 = arith.constant 0 : i32
    %c0_i32_0 = arith.constant 0 : i32
    %c0_i32_1 = arith.constant 0 : i32
    return %c0_i32, %c0_i32_0 : i32, i32
  }
  func.func @transform_5(%arg0: i32) -> (i32, i32) {
    %c0_i32 = arith.constant 0 : i32
    %c0_i32_0 = arith.constant 0 : i32
    %c0_i32_1 = arith.constant 0 : i32
    return %c0_i32, %c0_i32_0 : i32, i32
  }
  func.func @transform_6(%arg0: i32) -> (i32, i32) {
    %c0_i32 = arith.constant 0 : i32
    %c0_i32_0 = arith.constant 0 : i32
    %c0_i32_1 = arith.constant 0 : i32
    return %c0_i32, %c0_i32_0 : i32, i32
  }
  func.func @transform_7(%arg0: i32) -> (i32, i32) {
    %c0_i32 = arith.constant 0 : i32
    %c0_i32_0 = arith.constant 0 : i32
    %c0_i32_1 = arith.constant 0 : i32
    return %c0_i32, %c0_i32_0 : i32, i32
  }
  func.func @transform_8(%arg0: i32) -> (i32, i32, i32) {
    %c0_i32 = arith.constant 0 : i32
    %c0_i32_0 = arith.constant 0 : i32
    %c0_i32_1 = arith.constant 0 : i32
    return %arg0, %c0_i32, %c0_i32_0 : i32, i32, i32
  }
}

</mosaic_0001>

<llo_original>
// kernel: tpu_custom_call.1
$region0: #{tpu_custom_call.1}
  #allocation0 [shape = 'u32[]', space=smem, size = 0x4, offset = 0x4, fixed_abs, tag = 'smem constant byte address 0x4 - core index']
  #allocation1 [shape = 'u32[144,128]{1,0:T(1,128)}', space=vmem, size = 0x12000, scoped, tag = 'internal scratch']
  %s0 = inlined_call_operand.vmem [shape: f32[2,8,3], index: 0, kind: input, shape index: {}]
  %s1 = inlined_call_operand.vmem [shape: f32[2,8,32], index: 1, kind: input, shape index: {}]
  %s2 = inlined_call_operand.hbm [shape: f32[3,32], index: 2, kind: input, shape index: {}]
  %s3 = inlined_call_operand.vmem [shape: f32[1,32], index: 3, kind: input, shape index: {}]
  %s4 = inlined_call_operand.vmem [shape: bf16[32,64], index: 4, kind: input, shape index: {}]
  %s5 = inlined_call_operand.vmem [shape: f32[1,64], index: 5, kind: input, shape index: {}]
  %s6 = inlined_call_operand.hbm [shape: bf16[32,32], index: 6, kind: input, shape index: {}]
  %s7 = inlined_call_operand.vmem [shape: f32[1,32], index: 7, kind: input, shape index: {}]
  %s8 = inlined_call_operand.hbm [shape: f32[2,8,32], index: 8, kind: output, shape index: {}]
  %s9 = sld [smem:[#allocation0]]
  $region73: #{tpu_custom_call.1} parent=0
    _
  %s11 = ssub.s32 1, %s9
  %s12 = scalar_select 0, %s11, %s9
  $region1: #{tpu_custom_call.1} parent=0
    #allocation2 [shape = 'u8[2048]{0}', space=vmem, size = 0x800, scoped, tag = 'input window, operand 2, single buffered']
    #allocation3 [shape = 's32[2]{0}', space=sflag, size = 0x8, scoped, tag = 'scoped memory for tpu_custom_call.1']
    #allocation4 [shape = 's32[2]{0}', space=sflag, size = 0x8, scoped, tag = 'scoped memory for tpu_custom_call.1']
    #allocation5 [shape = 'u8[8192]{0}', space=vmem, size = 0x2000, scoped, tag = 'input window, operand 6, single buffered']
    #allocation6 [shape = 's32[1]{0}', space=sflag, size = 0x4, scoped, tag = 'scoped memory for tpu_custom_call.1']
    #allocation7 [shape = 'u8[8192]{0}', space=vmem, size = 0x2000, scoped, tag = 'output window, operand 0']
    %13 = vsyncpa [#allocation3], 0
    %14 = vsyncpa [#allocation6], 0
    %15 = vsyncpa [#allocation4], 0
    %s16 = scalar_lea.sflag [#allocation4], 1
    %17 = vsyncpa %s16, 0
    loop: start=0, step=1, limit=4
    $region2: #{tpu_custom_call.1} parent=1 // loop_pre_header
      _
    $region3: #{tpu_custom_call.1} parent=1 // loop_header
      %s19 = sphi 0, %s23
      %p20 = scmp.ge.s32.totalorder %s19, 4
      %s29 = sphi 0, %s31
      %s32 = sphi 0, %s29
      %s33 = sphi 0, %s32
      %s49 = sphi 0, %s33
      %s55 = sphi 0, %s57
      %s58 = sphi 0, %s55
      %s59 = sphi 0, %s58
      %s75 = sphi 0, %s59
      %s79 = sphi 0, %s79
      %s81 = sphi 0, %s79
      %s82 = sphi 0, %s81
      %s96 = sphi 0, %s82
      %s100 = sphi 0, %s100
      %s102 = sphi 0, %s100
      %s103 = sphi 0, %s102
      %s117 = sphi 0, %s103
      %s121 = sphi 0, %s121
      %s123 = sphi 0, %s121
      %s124 = sphi 0, %s123
      %s138 = sphi 0, %s124
      %s142 = sphi 0, %s142
      %s144 = sphi 0, %s142
      %s145 = sphi 0, %s144
      %s159 = sphi 0, %s145
      %s163 = sphi 0, %s163
      %s165 = sphi 0, %s163
      %s166 = sphi 0, %s165
      %s180 = sphi 0, %s166
      %s184 = sphi 0, %s184
      %s186 = sphi 0, %s184
      %s187 = sphi 0, %s186
      %s201 = sphi 0, %s187
      %s207 = sphi 0, %s209
      %s210 = sphi 0, %s207
      %s211 = sphi 0, %s210
      %s227 = sphi 0, %s211
    $region4: #{tpu_custom_call.1} parent=1 // loop_header_branch
      %22 = sbr.rel (%p20) target = $region8
    $region5: #{tpu_custom_call.1} parent=1 // loop_body
      %s24 = ssub.s32 %s19, 1
      %s25 = ssub.s32 %s19, 2
      %s26 = sadd.s32 %s19, 1
      %s27 = ssub.s32 %s19, %s26
      %p28 = scmp.eq.s32.totalorder %s27, 0
      %s30 = sadd.s32 %s29, 1
      %s31 = scalar_select %p28, %s29, %s30
      %p34 = pneg %p28
      %p35 = scmp.eq.s32.totalorder %s19, 1
      %p36 = por %p34, %p35
      %p37 = scmp.ne.s32.totalorder %s29, %s32
      %p38 = scmp.eq.s32.totalorder %s19, 0
      %p39 = por %p37, %p38
      %p40 = scmp.ne.s32.totalorder %s29, %s32
      %p41 = scmp.eq.s32.totalorder %s24, 1
      %p42 = por %p40, %p41
      %p43 = scmp.ne.s32.totalorder %s32, %s33
      %p44 = scmp.eq.s32.totalorder %s24, 0
      %p45 = por %p43, %p44
      %p46 = scmp.ne.s32.totalorder %s32, %s33
      %p47 = scmp.eq.s32.totalorder %s25, 1
      %p48 = por %p46, %p47
      %p50 = scmp.ne.s32.totalorder %s33, %s49
      %p51 = scmp.eq.s32.totalorder %s25, 0
      %p52 = por %p50, %p51
      %s53 = ssub.s32 %s19, %s26
      %p54 = scmp.eq.s32.totalorder %s53, 0
      %s56 = sadd.s32 %s55, 1
      %s57 = scalar_select %p54, %s55, %s56
      %p60 = pneg %p54
      %p61 = scmp.eq.s32.totalorder %s19, 1
      %p62 = por %p60, %p61
      %p63 = scmp.ne.s32.totalorder %s55, %s58
      %p64 = scmp.eq.s32.totalorder %s19, 0
      %p65 = por %p63, %p64
      %p66 = scmp.ne.s32.totalorder %s55, %s58
      %p67 = scmp.eq.s32.totalorder %s24, 1
      %p68 = por %p66, %p67
      %p69 = scmp.ne.s32.totalorder %s58, %s59
      %p70 = scmp.eq.s32.totalorder %s24, 0
      %p71 = por %p69, %p70
      %p72 = scmp.ne.s32.totalorder %s58, %s59
      %p73 = scmp.eq.s32.totalorder %s25, 1
      %p74 = por %p72, %p73
      %p76 = scmp.ne.s32.totalorder %s59, %s75
      %p77 = scmp.eq.s32.totalorder %s25, 0
      %p78 = por %p76, %p77
      %s80 = sadd.s32 %s79, 1
      %p83 = scmp.eq.s32.totalorder %s19, 1
      %p84 = scmp.ne.s32.totalorder %s79, %s81
      %p85 = scmp.eq.s32.totalorder %s19, 0
      %p86 = por %p84, %p85
      %p87 = scmp.ne.s32.totalorder %s79, %s81
      %p88 = scmp.eq.s32.totalorder %s24, 1
      %p89 = por %p87, %p88
      %p90 = scmp.ne.s32.totalorder %s81, %s82
      %p91 = scmp.eq.s32.totalorder %s24, 0
      %p92 = por %p90, %p91
      %p93 = scmp.ne.s32.totalorder %s81, %s82
      %p94 = scmp.eq.s32.totalorder %s25, 1
      %p95 = por %p93, %p94
      %p97 = scmp.ne.s32.totalorder %s82, %s96
      %p98 = scmp.eq.s32.totalorder %s25, 0
      %p99 = por %p97, %p98
      %s101 = sadd.s32 %s100, 1
      %p104 = scmp.eq.s32.totalorder %s19, 1
      %p105 = scmp.ne.s32.totalorder %s100, %s102
      %p106 = scmp.eq.s32.totalorder %s19, 0
      %p107 = por %p105, %p106
      %p108 = scmp.ne.s32.totalorder %s100, %s102
      %p109 = scmp.eq.s32.totalorder %s24, 1
      %p110 = por %p108, %p109
      %p111 = scmp.ne.s32.totalorder %s102, %s103
      %p112 = scmp.eq.s32.totalorder %s24, 0
      %p113 = por %p111, %p112
      %p114 = scmp.ne.s32.totalorder %s102, %s103
      %p115 = scmp.eq.s32.totalorder %s25, 1
      %p116 = por %p114, %p115
      %p118 = scmp.ne.s32.totalorder %s103, %s117
      %p119 = scmp.eq.s32.totalorder %s25, 0
      %p120 = por %p118, %p119
      %s122 = sadd.s32 %s121, 1
      %p125 = scmp.eq.s32.totalorder %s19, 1
      %p126 = scmp.ne.s32.totalorder %s121, %s123
      %p127 = scmp.eq.s32.totalorder %s19, 0
      %p128 = por %p126, %p127
      %p129 = scmp.ne.s32.totalorder %s121, %s123
      %p130 = scmp.eq.s32.totalorder %s24, 1
      %p131 = por %p129, %p130
      %p132 = scmp.ne.s32.totalorder %s123, %s124
      %p133 = scmp.eq.s32.totalorder %s24, 0
      %p134 = por %p132, %p133
      %p135 = scmp.ne.s32.totalorder %s123, %s124
      %p136 = scmp.eq.s32.totalorder %s25, 1
      %p137 = por %p135, %p136
      %p139 = scmp.ne.s32.totalorder %s124, %s138
      %p140 = scmp.eq.s32.totalorder %s25, 0
      %p141 = por %p139, %p140
      %s143 = sadd.s32 %s142, 1
      %p146 = scmp.eq.s32.totalorder %s19, 1
      %p147 = scmp.ne.s32.totalorder %s142, %s144
      %p148 = scmp.eq.s32.totalorder %s19, 0
      %p149 = por %p147, %p148
      %p150 = scmp.ne.s32.totalorder %s142, %s144
      %p151 = scmp.eq.s32.totalorder %s24, 1
      %p152 = por %p150, %p151
      %p153 = scmp.ne.s32.totalorder %s144, %s145
      %p154 = scmp.eq.s32.totalorder %s24, 0
      %p155 = por %p153, %p154
      %p156 = scmp.ne.s32.totalorder %s144, %s145
      %p157 = scmp.eq.s32.totalorder %s25, 1
      %p158 = por %p156, %p157
      %p160 = scmp.ne.s32.totalorder %s145, %s159
      %p161 = scmp.eq.s32.totalorder %s25, 0
      %p162 = por %p160, %p161
      %s164 = sadd.s32 %s163, 1
      %p167 = scmp.eq.s32.totalorder %s19, 1
      %p168 = scmp.ne.s32.totalorder %s163, %s165
      %p169 = scmp.eq.s32.totalorder %s19, 0
      %p170 = por %p168, %p169
      %p171 = scmp.ne.s32.totalorder %s163, %s165
      %p172 = scmp.eq.s32.totalorder %s24, 1
      %p173 = por %p171, %p172
      %p174 = scmp.ne.s32.totalorder %s165, %s166
      %p175 = scmp.eq.s32.totalorder %s24, 0
      %p176 = por %p174, %p175
      %p177 = scmp.ne.s32.totalorder %s165, %s166
      %p178 = scmp.eq.s32.totalorder %s25, 1
      %p179 = por %p177, %p178
      %p181 = scmp.ne.s32.totalorder %s166, %s180
      %p182 = scmp.eq.s32.totalorder %s25, 0
      %p183 = por %p181, %p182
      %s185 = sadd.s32 %s184, 1
      %p188 = scmp.eq.s32.totalorder %s19, 1
      %p189 = scmp.ne.s32.totalorder %s184, %s186
      %p190 = scmp.eq.s32.totalorder %s19, 0
      %p191 = por %p189, %p190
      %p192 = scmp.ne.s32.totalorder %s184, %s186
      %p193 = scmp.eq.s32.totalorder %s24, 1
      %p194 = por %p192, %p193
      %p195 = scmp.ne.s32.totalorder %s186, %s187
      %p196 = scmp.eq.s32.totalorder %s24, 0
      %p197 = por %p195, %p196
      %p198 = scmp.ne.s32.totalorder %s186, %s187
      %p199 = scmp.eq.s32.totalorder %s25, 1
      %p200 = por %p198, %p199
      %p202 = scmp.ne.s32.totalorder %s187, %s201
      %p203 = scmp.eq.s32.totalorder %s25, 0
      %p204 = por %p202, %p203
      %s205 = ssub.s32 %s19, %s26
      %p206 = scmp.eq.s32.totalorder %s205, 0
      %s208 = sadd.s32 %s207, 1
      %s209 = scalar_select %p206, %s207, %s208
      %p212 = pneg %p206
      %p213 = scmp.eq.s32.totalorder %s19, 1
      %p214 = por %p212, %p213
      %p215 = scmp.ne.s32.totalorder %s207, %s210
      %p216 = scmp.eq.s32.totalorder %s19, 0
      %p217 = por %p215, %p216
      %p218 = scmp.ne.s32.totalorder %s207, %s210
      %p219 = scmp.eq.s32.totalorder %s24, 1
      %p220 = por %p218, %p219
      %p221 = scmp.ne.s32.totalorder %s210, %s211
      %p222 = scmp.eq.s32.totalorder %s24, 0
      %p223 = por %p221, %p222
      %p224 = scmp.ne.s32.totalorder %s210, %s211
      %p225 = scmp.eq.s32.totalorder %s25, 1
      %p226 = por %p224, %p225
      %p228 = scmp.ne.s32.totalorder %s211, %s227
      %p229 = scmp.eq.s32.totalorder %s25, 0
      %p230 = por %p228, %p229
      %p231 = scmp.le.s32.totalorder 1, %s19
      %p232 = scmp.lt.s32.totalorder %s19, 3
      %p233 = pnand %p231, %p232
      %p234 = pneg %p233
      // Predicated region
      $region9: #{tpu_custom_call.1} parent=5 // pred_check
        _
      $region10: #{tpu_custom_call.1} parent=5 // pred_check_branch
        %236 = sbr.rel (%p233) target = $region12
      $region11: #{tpu_custom_call.1} parent=5 // pred_region
        %s237 = ssub.s32 %s19, 1
        // Predicated region
        $region13: #{tpu_custom_call.1} parent=11 // pred_check
          %p238 = pneg %p92
        $region14: #{tpu_custom_call.1} parent=11 // pred_check_branch
          %240 = sbr.rel (%p238) target = $region16
        $region15: #{tpu_custom_call.1} parent=11 // pred_region
          %s242 = ssub.s32 64, 64
          %243 = vsyncadd [#allocation3], %s242
          %s245 = sshll.u32 [#allocation2], 4
          %s246 = int_to_ptr.vmem [resolvable:$true] %s245
          %248 = dma.hbm_to_vmem [thread:$0]  %s2, 64, %s246, [#allocation3]
        $region16: #{tpu_custom_call.1} parent=11 // pred_fallthru
          _
        // Predicated region
        $region17: #{tpu_custom_call.1} parent=11 // pred_check
          %p249 = pneg %p113
        $region18: #{tpu_custom_call.1} parent=11 // pred_check_branch
          %251 = sbr.rel (%p249) target = $region20
        $region19: #{tpu_custom_call.1} parent=11 // pred_region
          _
        $region20: #{tpu_custom_call.1} parent=11 // pred_fallthru
          _
        // Predicated region
        $region21: #{tpu_custom_call.1} parent=11 // pred_check
          %p252 = pneg %p134
        $region22: #{tpu_custom_call.1} parent=11 // pred_check_branch
          %254 = sbr.rel (%p252) target = $region24
        $region23: #{tpu_custom_call.1} parent=11 // pred_region
          _
        $region24: #{tpu_custom_call.1} parent=11 // pred_fallthru
          _
        // Predicated region
        $region25: #{tpu_custom_call.1} parent=11 // pred_check
          %p255 = pneg %p155
        $region26: #{tpu_custom_call.1} parent=11 // pred_check_branch
          %257 = sbr.rel (%p255) target = $region28
        $region27: #{tpu_custom_call.1} parent=11 // pred_region
          _
        $region28: #{tpu_custom_call.1} parent=11 // pred_fallthru
          _
        // Predicated region
        $region29: #{tpu_custom_call.1} parent=11 // pred_check
          %p258 = pneg %p176
        $region30: #{tpu_custom_call.1} parent=11 // pred_check_branch
          %260 = sbr.rel (%p258) target = $region32
        $region31: #{tpu_custom_call.1} parent=11 // pred_region
          %s262 = ssub.s32 256, 256
          %263 = vsyncadd [#allocation6], %s262
          %s264 = sshll.u32 [#allocation5], 4
          %s265 = int_to_ptr.vmem [resolvable:$true] %s264
          %270 = dma.hbm_to_vmem [thread:$0]  %s6, 256, %s265, [#allocation6], 64, 64, 4
        $region32: #{tpu_custom_call.1} parent=11 // pred_fallthru
          _
        // Predicated region
        $region33: #{tpu_custom_call.1} parent=11 // pred_check
          %p271 = pneg %p197
        $region34: #{tpu_custom_call.1} parent=11 // pred_check_branch
          %273 = sbr.rel (%p271) target = $region36
        $region35: #{tpu_custom_call.1} parent=11 // pred_region
          _
        $region36: #{tpu_custom_call.1} parent=11 // pred_fallthru
          _
      $region12: #{tpu_custom_call.1} parent=5 // pred_fallthru
        _
      %p274 = scmp.lt.s32.totalorder %s19, 2
      // Predicated region
      $region37: #{tpu_custom_call.1} parent=5 // pred_check
        %p275 = pneg %p274
      $region38: #{tpu_custom_call.1} parent=5 // pred_check_branch
        %277 = sbr.rel (%p275) target = $region40
      $region39: #{tpu_custom_call.1} parent=5 // pred_region
        // Predicated region
        $region41: #{tpu_custom_call.1} parent=39 // pred_check
          %p278 = pneg %p39
        $region42: #{tpu_custom_call.1} parent=39 // pred_check_branch
          %280 = sbr.rel (%p278) target = $region44
        $region43: #{tpu_custom_call.1} parent=39 // pred_region
          %p281 = scmp.lt.s32.totalorder %s19, 1
          %s282 = scalar_select %p281, %s19, 1
          %s283 = smul.addr %s282, 8
          %s284 = scalar_lea.vmem %s0, %s283
        $region44: #{tpu_custom_call.1} parent=39 // pred_fallthru
          _
        // Predicated region
        $region45: #{tpu_custom_call.1} parent=39 // pred_check
          %p285 = pneg %p65
        $region46: #{tpu_custom_call.1} parent=39 // pred_check_branch
          %287 = sbr.rel (%p285) target = $region48
        $region47: #{tpu_custom_call.1} parent=39 // pred_region
          %p288 = scmp.lt.s32.totalorder %s19, 1
          %s289 = scalar_select %p288, %s19, 1
          %s290 = smul.addr %s289, 8
          %s291 = scalar_lea.vmem %s1, %s290
        $region48: #{tpu_custom_call.1} parent=39 // pred_fallthru
          _
      $region40: #{tpu_custom_call.1} parent=5 // pred_fallthru
        _
      %p292 = scmp.le.s32.totalorder 1, %s19
      %p293 = scmp.lt.s32.totalorder %s19, 3
      %p294 = pnand %p292, %p293
      %p295 = pneg %p294
      // Predicated region
      $region49: #{tpu_custom_call.1} parent=5 // pred_check
        _
      $region50: #{tpu_custom_call.1} parent=5 // pred_check_branch
        %297 = sbr.rel (%p294) target = $region52
      $region51: #{tpu_custom_call.1} parent=5 // pred_region
        %s298 = ssub.s32 %s19, 1
        // Predicated region
        $region53: #{tpu_custom_call.1} parent=51 // pred_check
          %p299 = pneg %p92
        $region54: #{tpu_custom_call.1} parent=51 // pred_check_branch
          %301 = sbr.rel (%p299) target = $region56
        $region55: #{tpu_custom_call.1} parent=51 // pred_region
          %302 = dma.done [#allocation3], 64
        $region56: #{tpu_custom_call.1} parent=51 // pred_fallthru
          _
        // Predicated region
        $region57: #{tpu_custom_call.1} parent=51 // pred_check
          %p303 = pneg %p176
        $region58: #{tpu_custom_call.1} parent=51 // pred_check_branch
          %305 = sbr.rel (%p303) target = $region60
        $region59: #{tpu_custom_call.1} parent=51 // pred_region
          %306 = dma.done [#allocation6], 256
        $region60: #{tpu_custom_call.1} parent=51 // pred_fallthru
          _
        %p307 = scmp.lt.s32.totalorder %s24, 1
        %s308 = scalar_select %p307, %s24, 1
        %s309 = smul.addr %s308, 8
        %s310 = scalar_lea.vmem %s0, %s309
        %p311 = pneg %p45
        %p312 = pneg %p42
        %p313 = scmp.lt.s32.totalorder %s24, 1
        %s314 = scalar_select %p313, %s24, 1
        %s315 = smul.addr %s314, 8
        %s316 = scalar_lea.vmem %s1, %s315
        %p317 = pneg %p71
        %p318 = pneg %p68
        %p319 = pneg %p92
        %p320 = pneg %p89
        %p321 = pneg %p113
        %p322 = pneg %p110
        %p323 = pneg %p134
        %p324 = pneg %p131
        %p325 = pneg %p155
        %p326 = pneg %p152
        %p327 = pneg %p176
        %p328 = pneg %p173
        %p329 = pneg %p197
        %p330 = pneg %p194
        %p331 = pneg %p223
        %p332 = pneg %p220
        %s333 = sand.u32 %s210, 1
        %s334 = scalar_lea.sflag [#allocation4], %s333
        %s335 = sand.u32 %s210, 1
        %s336 = smul.addr %s335, 8
        %s337 = scalar_lea.vmem [#allocation7], %s336
        %p338 = scmp.lt.s32.totalorder %s24, 1
        %s339 = scalar_select %p338, %s24, 1
        %s340 = smul.addr %s339, 8
        %s341 = scalar_lea.vmem %s0, %s340
        %p342 = scmp.lt.s32.totalorder %s24, 1
        %s343 = scalar_select %p342, %s24, 1
        %s344 = smul.addr %s343, 8
        %s345 = scalar_lea.vmem %s1, %s344
        %v347 = vld [vmem:[%s345] sm:$0xff]
        %v348 = vld [vmem:[%s341] sm:$0xff]
        %v349 = vpack.c.bf16 %v347, %v347
        %v350 = vld [vmem:[%s4] sm:$0xf]
        %v351 = vld [vmem:[%s4 + $0x4] sm:$0xf]
        %v352 = vld [vmem:[%s4 + $0x8] sm:$0xf]
        %v353 = vld [vmem:[%s4 + $0xc] sm:$0xf]
        %v354 = vld [vmem:[%s5] sm:$0x1]
        %v356 = vlaneseq
        %v357 = vshrl.u32 %v356, 7
        %v358 = vsub.s32 0, %v357
        %v359 = vrot.slane %v354, %v358
        %v365 = vunpack.c.l.b16 %v350
        %v366 = vunpack.c.l.b16 %v351
        %v367 = vunpack.c.l.b16 %v352
        %v368 = vunpack.c.l.b16 %v353
        %v369 = vpack.c.b16 %v366, %v365
        %v370 = vpack.c.b16 %v368, %v367
        %vm373 = vcmask 261120
        %v375 = vsel %vm373, %v349, 0
        %377 = vmatprep.subr.bf16.mxu0 0
        %378 = vmatpush1.bf16.msra.mxu0 %v369
        %379 = vmatprep.subr.bf16.mxu0 0
        %380 = vmatpush1.bf16.msra.mxu0 %v370
        %381 = vmatprep.subr.bf16.mxu0 0
        %382 = vmatpush1.bf16.msra.mxu0 0
        %383 = vmatprep.subr.bf16.mxu0 0
        %384 = vmatpush1.bf16.msra.mxu0 0
        %385 = vmatprep.subr.bf16.mxu0 0
        %386 = vmatpush1.bf16.msra.mxu0 0
        %387 = vmatprep.subr.bf16.mxu0 0
        %388 = vmatpush1.bf16.msra.mxu0 0
        %389 = vmatprep.subr.bf16.mxu0 0
        %390 = vmatpush1.bf16.msra.mxu0 0
        %391 = vmatprep.subr.bf16.mxu0 0
        %392 = vmatpush1.bf16.msra.mxu0 0
        %393 = vmatprep.subr.bf16.mxu0 0
        %394 = vmatpush1.bf16.msra.mxu0 0
        %395 = vmatprep.subr.bf16.mxu0 0
        %396 = vmatpush1.bf16.msra.mxu0 0
        %397 = vmatprep.subr.bf16.mxu0 0
        %398 = vmatpush1.bf16.msra.mxu0 0
        %399 = vmatprep.subr.bf16.mxu0 0
        %400 = vmatpush1.bf16.msra.mxu0 0
        %401 = vmatprep.subr.bf16.mxu0 0
        %402 = vmatpush1.bf16.msra.mxu0 0
        %403 = vmatprep.subr.bf16.mxu0 0
        %404 = vmatpush1.bf16.msra.mxu0 0
        %405 = vmatprep.subr.bf16.mxu0 0
        %406 = vmatpush1.bf16.msra.mxu0 0
        %407 = vmatprep.subr.bf16.mxu0 0
        %408 = vmatpush1.bf16.msra.mxu0 0
        %409 = vmatprep.mubr.bf16.mxu0 0
        %410 = vmatmul.mubr.bf16.gmra.mrb[0].mxu0 %v375
        %v411 = vpop.f32.mrb[0].mxu0
        %v412 = vadd.f32 %v359, %v411
        %v413 = vpop.f32.mrb[0].mxu0
        %v414 = vpop.f32.mrb[0].mxu0
        %v415 = vpop.f32.mrb[0].mxu0
        %416 = vdwg.mxu0
        %v417 = vpack.c.bf16 %v412, %v412
        %v418 = vld [vmem:[#allocation2] sm:$0x7]
        %420 = vset.pattern.permute.xlu0 0
        %421 = vperm.xlu0 %420, %v348
        %v422 = vpop.permute.xlu0 %421
        %v424 = vlaneseq
        %v425 = vshrl.u32 %v424, 7
        %v426 = vsub.s32 0, %v425
        %v427 = vrot.slane %v418, %v426
        %v428 = vmul.f32 %v422, %v427
        %429 = vset.pattern.permute.xlu0 1
        %430 = vperm.xlu0 %429, %v348
        %v431 = vpop.permute.xlu0 %430
        %v433 = vlaneseq
        %v434 = vshrl.u32 %v433, 7
        %v435 = vsub.s32 1, %v434
        %v436 = vrot.slane %v418, %v435
        %v437 = vmul.f32 %v431, %v436
        %v438 = vadd.f32 %v428, %v437
        %439 = vset.pattern.permute.xlu0 2
        %440 = vperm.xlu0 %439, %v348
        %v441 = vpop.permute.xlu0 %440
        %v443 = vlaneseq
        %v444 = vshrl.u32 %v443, 7
        %v445 = vsub.s32 2, %v444
        %v446 = vrot.slane %v418, %v445
        %v447 = vmul.f32 %v441, %v446
        %v448 = vadd.f32 %v438, %v447
        %v449 = vld [vmem:[%s3] sm:$0x1]
        %v451 = vlaneseq
        %v452 = vshrl.u32 %v451, 7
        %v453 = vsub.s32 0, %v452
        %v454 = vrot.slane %v449, %v453
        %v456 = vadd.f32 %v448, %v454
        %v457 = vpack.c.bf16 %v456, %v456
        %v458 = vld [vmem:[#allocation5] sm:$0xf]
        %v459 = vld [vmem:[#allocation5 + $0x4] sm:$0xf]
        %v460 = vld [vmem:[#allocation5 + $0x8] sm:$0xf]
        %v461 = vld [vmem:[#allocation5 + $0xc] sm:$0xf]
        %vm462 = vcmask 64512
        %v464 = vsel %vm462, %v457, 0
        %v467 = vsel %vm462, %v417, 0
        %469 = vmatprep.subr.bf16.mxu0 0
        %470 = vmatpush1.bf16.xpose.msra.mxu0 %v467
        %471 = vmatprep.subr.bf16.mxu0 0
        %472 = vmatpush1.bf16.xpose.msra.mxu0 0
        %473 = vmatprep.subr.bf16.mxu0 0
        %474 = vmatpush1.bf16.xpose.msra.mxu0 0
        %475 = vmatprep.subr.bf16.mxu0 0
        %476 = vmatpush1.bf16.xpose.msra.mxu0 0
        %477 = vmatprep.subr.bf16.mxu0 0
        %478 = vmatpush1.bf16.xpose.msra.mxu0 0
        %479 = vmatprep.subr.bf16.mxu0 0
        %480 = vmatpush1.bf16.xpose.msra.mxu0 0
        %481 = vmatprep.subr.bf16.mxu0 0
        %482 = vmatpush1.bf16.xpose.msra.mxu0 0
        %483 = vmatprep.subr.bf16.mxu0 0
        %484 = vmatpush1.bf16.xpose.msra.mxu0 0
        %485 = vmatprep.subr.bf16.mxu0 0
        %486 = vmatpush1.bf16.xpose.msra.mxu0 0
        %487 = vmatprep.subr.bf16.mxu0 0
        %488 = vmatpush1.bf16.xpose.msra.mxu0 0
        %489 = vmatprep.subr.bf16.mxu0 0
        %490 = vmatpush1.bf16.xpose.msra.mxu0 0
        %491 = vmatprep.subr.bf16.mxu0 0
        %492 = vmatpush1.bf16.xpose.msra.mxu0 0
        %493 = vmatprep.subr.bf16.mxu0 0
        %494 = vmatpush1.bf16.xpose.msra.mxu0 0
        %495 = vmatprep.subr.bf16.mxu0 0
        %496 = vmatpush1.bf16.xpose.msra.mxu0 0
        %497 = vmatprep.subr.bf16.mxu0 0
        %498 = vmatpush1.bf16.xpose.msra.mxu0 0
        %499 = vmatprep.subr.bf16.mxu0 0
        %500 = vmatpush1.bf16.xpose.msra.mxu0 0
        %501 = vmatprep.mubr.bf16.mxu0 0
        %502 = vmatmul.mubr.bf16.gmra.mrb[0].mxu0 %v464
        %v503 = vpop.f32.mrb[0].mxu0
        %v504 = vadd.f32 0.0, %v503
        %v505 = vpop.f32.mrb[0].mxu0
        %v506 = vpop.f32.mrb[0].mxu0
        %v507 = vpop.f32.mrb[0].mxu0
        %508 = vdwg.mxu0
        %v509 = vsel %vm462, %v504, -inf
        %510 = vmax.xlane.f32.xlu0 %v509
        %v511 = vpop.xlane.xlu0 %510
        %v512 = vsub.f32 %v504, %v511
        %v513 = vmul.f32 %v512, 1.442695
        %v514 = vpow.pop %v513
        %v515 = vsel %vm462, %v514, 0.0
        %516 = vadd.xlane.f32.xlu0 %v515
        %v517 = vpop.xlane.xlu0 %516
        %v518 = vrcp.pop %v517
        %v519 = vmul.f32 %v514, %v518
        %v520 = vpack.c.bf16 %v519, %v519
        %522 = vrot.lane.b32.xlu0 %v417, 96
        %v523 = vpop.permute.xlu0 %522
        %v525 = vsel %vm462, %v520, 0
        %vm527 = vcmask 1043456
        %v529 = vsel %vm527, %v523, 0
        %531 = vmatprep.subr.bf16.mxu0 0
        %532 = vmatpush1.bf16.msra.mxu0 %v529
        %533 = vmatprep.subr.bf16.mxu0 0
        %534 = vmatpush1.bf16.msra.mxu0 0
        %535 = vmatprep.subr.bf16.mxu0 0
        %536 = vmatpush1.bf16.msra.mxu0 0
        %537 = vmatprep.subr.bf16.mxu0 0
        %538 = vmatpush1.bf16.msra.mxu0 0
        %539 = vmatprep.subr.bf16.mxu0 0
        %540 = vmatpush1.bf16.msra.mxu0 0
        %541 = vmatprep.subr.bf16.mxu0 0
        %542 = vmatpush1.bf16.msra.mxu0 0
        %543 = vmatprep.subr.bf16.mxu0 0
        %544 = vmatpush1.bf16.msra.mxu0 0
        %545 = vmatprep.subr.bf16.mxu0 0
        %546 = vmatpush1.bf16.msra.mxu0 0
        %547 = vmatprep.subr.bf16.mxu0 0
        %548 = vmatpush1.bf16.msra.mxu0 0
        %549 = vmatprep.subr.bf16.mxu0 0
        %550 = vmatpush1.bf16.msra.mxu0 0
        %551 = vmatprep.subr.bf16.mxu0 0
        %552 = vmatpush1.bf16.msra.mxu0 0
        %553 = vmatprep.subr.bf16.mxu0 0
        %554 = vmatpush1.bf16.msra.mxu0 0
        %555 = vmatprep.subr.bf16.mxu0 0
        %556 = vmatpush1.bf16.msra.mxu0 0
        %557 = vmatprep.subr.bf16.mxu0 0
        %558 = vmatpush1.bf16.msra.mxu0 0
        %559 = vmatprep.subr.bf16.mxu0 0
        %560 = vmatpush1.bf16.msra.mxu0 0
        %561 = vmatprep.subr.bf16.mxu0 0
        %562 = vmatpush1.bf16.msra.mxu0 0
        %563 = vmatprep.mubr.bf16.mxu0 0
        %564 = vmatmul.mubr.bf16.gmra.mrb[0].mxu0 %v525
        %v565 = vpop.f32.mrb[0].mxu0
        %v566 = vadd.f32 0.0, %v565
        %v567 = vpop.f32.mrb[0].mxu0
        %v568 = vpop.f32.mrb[0].mxu0
        %v569 = vpop.f32.mrb[0].mxu0
        %570 = vdwg.mxu0
        %v571 = vpack.c.bf16 %v566, %v566
        %573 = vrot.lane.b32.xlu0 %v457, 120
        %v574 = vpop.permute.xlu0 %573
        %575 = vrot.lane.b32.xlu0 %v417, 120
        %v576 = vpop.permute.xlu0 %575
        %v578 = vsel %vm462, %v574, 0
        %v581 = vsel %vm462, %v576, 0
        %583 = vmatprep.subr.bf16.mxu0 0
        %584 = vmatpush1.bf16.xpose.msra.mxu0 %v581
        %585 = vmatprep.subr.bf16.mxu0 0
        %586 = vmatpush1.bf16.xpose.msra.mxu0 0
        %587 = vmatprep.subr.bf16.mxu0 0
        %588 = vmatpush1.bf16.xpose.msra.mxu0 0
        %589 = vmatprep.subr.bf16.mxu0 0
        %590 = vmatpush1.bf16.xpose.msra.mxu0 0
        %591 = vmatprep.subr.bf16.mxu0 0
        %592 = vmatpush1.bf16.xpose.msra.mxu0 0
        %593 = vmatprep.subr.bf16.mxu0 0
        %594 = vmatpush1.bf16.xpose.msra.mxu0 0
        %595 = vmatprep.subr.bf16.mxu0 0
        %596 = vmatpush1.bf16.xpose.msra.mxu0 0
        %597 = vmatprep.subr.bf16.mxu0 0
        %598 = vmatpush1.bf16.xpose.msra.mxu0 0
        %599 = vmatprep.subr.bf16.mxu0 0
        %600 = vmatpush1.bf16.xpose.msra.mxu0 0
        %601 = vmatprep.subr.bf16.mxu0 0
        %602 = vmatpush1.bf16.xpose.msra.mxu0 0
        %603 = vmatprep.subr.bf16.mxu0 0
        %604 = vmatpush1.bf16.xpose.msra.mxu0 0
        %605 = vmatprep.subr.bf16.mxu0 0
        %606 = vmatpush1.bf16.xpose.msra.mxu0 0
        %607 = vmatprep.subr.bf16.mxu0 0
        %608 = vmatpush1.bf16.xpose.msra.mxu0 0
        %609 = vmatprep.subr.bf16.mxu0 0
        %610 = vmatpush1.bf16.xpose.msra.mxu0 0
        %611 = vmatprep.subr.bf16.mxu0 0
        %612 = vmatpush1.bf16.xpose.msra.mxu0 0
        %613 = vmatprep.subr.bf16.mxu0 0
        %614 = vmatpush1.bf16.xpose.msra.mxu0 0
        %615 = vmatprep.mubr.bf16.mxu0 0
        %616 = vmatmul.mubr.bf16.gmra.mrb[0].mxu0 %v578
        %v617 = vpop.f32.mrb[0].mxu0
        %v618 = vadd.f32 0.0, %v617
        %v619 = vpop.f32.mrb[0].mxu0
        %v620 = vpop.f32.mrb[0].mxu0
        %v621 = vpop.f32.mrb[0].mxu0
        %622 = vdwg.mxu0
        %v623 = vsel %vm462, %v618, -inf
        %624 = vmax.xlane.f32.xlu0 %v623
        %v625 = vpop.xlane.xlu0 %624
        %v626 = vsub.f32 %v618, %v625
        %v627 = vmul.f32 %v626, 1.442695
        %v628 = vpow.pop %v627
        %v629 = vsel %vm462, %v628, 0.0
        %630 = vadd.xlane.f32.xlu0 %v629
        %v631 = vpop.xlane.xlu0 %630
        %v632 = vrcp.pop %v631
        %v633 = vmul.f32 %v628, %v632
        %v634 = vpack.c.bf16 %v633, %v633
        %635 = vrot.lane.b32.xlu0 %v417, 88
        %v636 = vpop.permute.xlu0 %635
        %v638 = vsel %vm462, %v634, 0
        %v641 = vsel %vm527, %v636, 0
        %643 = vmatprep.subr.bf16.mxu0 0
        %644 = vmatpush1.bf16.msra.mxu0 %v641
        %645 = vmatprep.subr.bf16.mxu0 0
        %646 = vmatpush1.bf16.msra.mxu0 0
        %647 = vmatprep.subr.bf16.mxu0 0
        %648 = vmatpush1.bf16.msra.mxu0 0
        %649 = vmatprep.subr.bf16.mxu0 0
        %650 = vmatpush1.bf16.msra.mxu0 0
        %651 = vmatprep.subr.bf16.mxu0 0
        %652 = vmatpush1.bf16.msra.mxu0 0
        %653 = vmatprep.subr.bf16.mxu0 0
        %654 = vmatpush1.bf16.msra.mxu0 0
        %655 = vmatprep.subr.bf16.mxu0 0
        %656 = vmatpush1.bf16.msra.mxu0 0
        %657 = vmatprep.subr.bf16.mxu0 0
        %658 = vmatpush1.bf16.msra.mxu0 0
        %659 = vmatprep.subr.bf16.mxu0 0
        %660 = vmatpush1.bf16.msra.mxu0 0
        %661 = vmatprep.subr.bf16.mxu0 0
        %662 = vmatpush1.bf16.msra.mxu0 0
        %663 = vmatprep.subr.bf16.mxu0 0
        %664 = vmatpush1.bf16.msra.mxu0 0
        %665 = vmatprep.subr.bf16.mxu0 0
        %666 = vmatpush1.bf16.msra.mxu0 0
        %667 = vmatprep.subr.bf16.mxu0 0
        %668 = vmatpush1.bf16.msra.mxu0 0
        %669 = vmatprep.subr.bf16.mxu0 0
        %670 = vmatpush1.bf16.msra.mxu0 0
        %671 = vmatprep.subr.bf16.mxu0 0
        %672 = vmatpush1.bf16.msra.mxu0 0
        %673 = vmatprep.subr.bf16.mxu0 0
        %674 = vmatpush1.bf16.msra.mxu0 0
        %675 = vmatprep.mubr.bf16.mxu0 0
        %676 = vmatmul.mubr.bf16.gmra.mrb[0].mxu0 %v638
        %v677 = vpop.f32.mrb[0].mxu0
        %v678 = vadd.f32 0.0, %v677
        %v679 = vpop.f32.mrb[0].mxu0
        %v680 = vpop.f32.mrb[0].mxu0
        %v681 = vpop.f32.mrb[0].mxu0
        %682 = vdwg.mxu0
        %v683 = vpack.c.bf16 %v678, %v678
        %v685 = vsel %vm462, %v683, 0
        %v688 = vsel %vm527, %v459, 0
        %690 = vmatprep.subr.bf16.mxu0 0
        %691 = vmatpush1.bf16.msra.mxu0 %v688
        %692 = vmatprep.subr.bf16.mxu0 0
        %693 = vmatpush1.bf16.msra.mxu0 0
        %694 = vmatprep.subr.bf16.mxu0 0
        %695 = vmatpush1.bf16.msra.mxu0 0
        %696 = vmatprep.subr.bf16.mxu0 0
        %697 = vmatpush1.bf16.msra.mxu0 0
        %698 = vmatprep.subr.bf16.mxu0 0
        %699 = vmatpush1.bf16.msra.mxu0 0
        %700 = vmatprep.subr.bf16.mxu0 0
        %701 = vmatpush1.bf16.msra.mxu0 0
        %702 = vmatprep.subr.bf16.mxu0 0
        %703 = vmatpush1.bf16.msra.mxu0 0
        %704 = vmatprep.subr.bf16.mxu0 0
        %705 = vmatpush1.bf16.msra.mxu0 0
        %706 = vmatprep.subr.bf16.mxu0 0
        %707 = vmatpush1.bf16.msra.mxu0 0
        %708 = vmatprep.subr.bf16.mxu0 0
        %709 = vmatpush1.bf16.msra.mxu0 0
        %710 = vmatprep.subr.bf16.mxu0 0
        %711 = vmatpush1.bf16.msra.mxu0 0
        %712 = vmatprep.subr.bf16.mxu0 0
        %713 = vmatpush1.bf16.msra.mxu0 0
        %714 = vmatprep.subr.bf16.mxu0 0
        %715 = vmatpush1.bf16.msra.mxu0 0
        %716 = vmatprep.subr.bf16.mxu0 0
        %717 = vmatpush1.bf16.msra.mxu0 0
        %718 = vmatprep.subr.bf16.mxu0 0
        %719 = vmatpush1.bf16.msra.mxu0 0
        %720 = vmatprep.subr.bf16.mxu0 0
        %721 = vmatpush1.bf16.msra.mxu0 0
        %722 = vmatprep.mubr.bf16.mxu0 0
        %723 = vmatmul.mubr.bf16.gmra.mrb[0].mxu0 %v685
        %v724 = vpop.f32.mrb[0].mxu0
        %v725 = vadd.f32 0.0, %v724
        %v726 = vpop.f32.mrb[0].mxu0
        %v727 = vpop.f32.mrb[0].mxu0
        %v728 = vpop.f32.mrb[0].mxu0
        %729 = vdwg.mxu0
        %v731 = vsel %vm462, %v571, 0
        %v734 = vsel %vm527, %v458, 0
        %736 = vmatprep.subr.bf16.mxu0 0
        %737 = vmatpush1.bf16.msra.mxu0 %v734
        %738 = vmatprep.subr.bf16.mxu0 0
        %739 = vmatpush1.bf16.msra.mxu0 0
        %740 = vmatprep.subr.bf16.mxu0 0
        %741 = vmatpush1.bf16.msra.mxu0 0
        %742 = vmatprep.subr.bf16.mxu0 0
        %743 = vmatpush1.bf16.msra.mxu0 0
        %744 = vmatprep.subr.bf16.mxu0 0
        %745 = vmatpush1.bf16.msra.mxu0 0
        %746 = vmatprep.subr.bf16.mxu0 0
        %747 = vmatpush1.bf16.msra.mxu0 0
        %748 = vmatprep.subr.bf16.mxu0 0
        %749 = vmatpush1.bf16.msra.mxu0 0
        %750 = vmatprep.subr.bf16.mxu0 0
        %751 = vmatpush1.bf16.msra.mxu0 0
        %752 = vmatprep.subr.bf16.mxu0 0
        %753 = vmatpush1.bf16.msra.mxu0 0
        %754 = vmatprep.subr.bf16.mxu0 0
        %755 = vmatpush1.bf16.msra.mxu0 0
        %756 = vmatprep.subr.bf16.mxu0 0
        %757 = vmatpush1.bf16.msra.mxu0 0
        %758 = vmatprep.subr.bf16.mxu0 0
        %759 = vmatpush1.bf16.msra.mxu0 0
        %760 = vmatprep.subr.bf16.mxu0 0
        %761 = vmatpush1.bf16.msra.mxu0 0
        %762 = vmatprep.subr.bf16.mxu0 0
        %763 = vmatpush1.bf16.msra.mxu0 0
        %764 = vmatprep.subr.bf16.mxu0 0
        %765 = vmatpush1.bf16.msra.mxu0 0
        %766 = vmatprep.subr.bf16.mxu0 0
        %767 = vmatpush1.bf16.msra.mxu0 0
        %768 = vmatprep.mubr.bf16.mxu0 0
        %769 = vmatmul.mubr.bf16.gmra.mrb[0].mxu0 %v731
        %v770 = vpop.f32.mrb[0].mxu0
        %v771 = vadd.f32 %v725, %v770
        %v772 = vpop.f32.mrb[0].mxu0
        %v773 = vpop.f32.mrb[0].mxu0
        %v774 = vpop.f32.mrb[0].mxu0
        %775 = vdwg.mxu0
        %776 = vrot.lane.b32.xlu0 %v457, 112
        %v777 = vpop.permute.xlu0 %776
        %778 = vrot.lane.b32.xlu0 %v417, 112
        %v779 = vpop.permute.xlu0 %778
        %v781 = vsel %vm462, %v777, 0
        %v784 = vsel %vm462, %v779, 0
        %786 = vmatprep.subr.bf16.mxu0 0
        %787 = vmatpush1.bf16.xpose.msra.mxu0 %v784
        %788 = vmatprep.subr.bf16.mxu0 0
        %789 = vmatpush1.bf16.xpose.msra.mxu0 0
        %790 = vmatprep.subr.bf16.mxu0 0
        %791 = vmatpush1.bf16.xpose.msra.mxu0 0
        %792 = vmatprep.subr.bf16.mxu0 0
        %793 = vmatpush1.bf16.xpose.msra.mxu0 0
        %794 = vmatprep.subr.bf16.mxu0 0
        %795 = vmatpush1.bf16.xpose.msra.mxu0 0
        %796 = vmatprep.subr.bf16.mxu0 0
        %797 = vmatpush1.bf16.xpose.msra.mxu0 0
        %798 = vmatprep.subr.bf16.mxu0 0
        %799 = vmatpush1.bf16.xpose.msra.mxu0 0
        %800 = vmatprep.subr.bf16.mxu0 0
        %801 = vmatpush1.bf16.xpose.msra.mxu0 0
        %802 = vmatprep.subr.bf16.mxu0 0
        %803 = vmatpush1.bf16.xpose.msra.mxu0 0
        %804 = vmatprep.subr.bf16.mxu0 0
        %805 = vmatpush1.bf16.xpose.msra.mxu0 0
        %806 = vmatprep.subr.bf16.mxu0 0
        %807 = vmatpush1.bf16.xpose.msra.mxu0 0
        %808 = vmatprep.subr.bf16.mxu0 0
        %809 = vmatpush1.bf16.xpose.msra.mxu0 0
        %810 = vmatprep.subr.bf16.mxu0 0
        %811 = vmatpush1.bf16.xpose.msra.mxu0 0
        %812 = vmatprep.subr.bf16.mxu0 0
        %813 = vmatpush1.bf16.xpose.msra.mxu0 0
        %814 = vmatprep.subr.bf16.mxu0 0
        %815 = vmatpush1.bf16.xpose.msra.mxu0 0
        %816 = vmatprep.subr.bf16.mxu0 0
        %817 = vmatpush1.bf16.xpose.msra.mxu0 0
        %818 = vmatprep.mubr.bf16.mxu0 0
        %819 = vmatmul.mubr.bf16.gmra.mrb[0].mxu0 %v781
        %v820 = vpop.f32.mrb[0].mxu0
        %v821 = vadd.f32 0.0, %v820
        %v822 = vpop.f32.mrb[0].mxu0
        %v823 = vpop.f32.mrb[0].mxu0
        %v824 = vpop.f32.mrb[0].mxu0
        %825 = vdwg.mxu0
        %v826 = vsel %vm462, %v821, -inf
        %827 = vmax.xlane.f32.xlu0 %v826
        %v828 = vpop.xlane.xlu0 %827
        %v829 = vsub.f32 %v821, %v828
        %v830 = vmul.f32 %v829, 1.442695
        %v831 = vpow.pop %v830
        %v832 = vsel %vm462, %v831, 0.0
        %833 = vadd.xlane.f32.xlu0 %v832
        %v834 = vpop.xlane.xlu0 %833
        %v835 = vrcp.pop %v834
        %v836 = vmul.f32 %v831, %v835
        %v837 = vpack.c.bf16 %v836, %v836
        %838 = vrot.lane.b32.xlu0 %v417, 80
        %v839 = vpop.permute.xlu0 %838
        %v841 = vsel %vm462, %v837, 0
        %v844 = vsel %vm527, %v839, 0
        %846 = vmatprep.subr.bf16.mxu0 0
        %847 = vmatpush1.bf16.msra.mxu0 %v844
        %848 = vmatprep.subr.bf16.mxu0 0
        %849 = vmatpush1.bf16.msra.mxu0 0
        %850 = vmatprep.subr.bf16.mxu0 0
        %851 = vmatpush1.bf16.msra.mxu0 0
        %852 = vmatprep.subr.bf16.mxu0 0
        %853 = vmatpush1.bf16.msra.mxu0 0
        %854 = vmatprep.subr.bf16.mxu0 0
        %855 = vmatpush1.bf16.msra.mxu0 0
        %856 = vmatprep.subr.bf16.mxu0 0
        %857 = vmatpush1.bf16.msra.mxu0 0
        %858 = vmatprep.subr.bf16.mxu0 0
        %859 = vmatpush1.bf16.msra.mxu0 0
        %860 = vmatprep.subr.bf16.mxu0 0
        %861 = vmatpush1.bf16.msra.mxu0 0
        %862 = vmatprep.subr.bf16.mxu0 0
        %863 = vmatpush1.bf16.msra.mxu0 0
        %864 = vmatprep.subr.bf16.mxu0 0
        %865 = vmatpush1.bf16.msra.mxu0 0
        %866 = vmatprep.subr.bf16.mxu0 0
        %867 = vmatpush1.bf16.msra.mxu0 0
        %868 = vmatprep.subr.bf16.mxu0 0
        %869 = vmatpush1.bf16.msra.mxu0 0
        %870 = vmatprep.subr.bf16.mxu0 0
        %871 = vmatpush1.bf16.msra.mxu0 0
        %872 = vmatprep.subr.bf16.mxu0 0
        %873 = vmatpush1.bf16.msra.mxu0 0
        %874 = vmatprep.subr.bf16.mxu0 0
        %875 = vmatpush1.bf16.msra.mxu0 0
        %876 = vmatprep.subr.bf16.mxu0 0
        %877 = vmatpush1.bf16.msra.mxu0 0
        %878 = vmatprep.mubr.bf16.mxu0 0
        %879 = vmatmul.mubr.bf16.gmra.mrb[0].mxu0 %v841
        %v880 = vpop.f32.mrb[0].mxu0
        %v881 = vadd.f32 0.0, %v880
        %v882 = vpop.f32.mrb[0].mxu0
        %v883 = vpop.f32.mrb[0].mxu0
        %v884 = vpop.f32.mrb[0].mxu0
        %885 = vdwg.mxu0
        %v886 = vpack.c.bf16 %v881, %v881
        %v888 = vsel %vm462, %v886, 0
        %v891 = vsel %vm527, %v460, 0
        %893 = vmatprep.subr.bf16.mxu0 0
        %894 = vmatpush1.bf16.msra.mxu0 %v891
        %895 = vmatprep.subr.bf16.mxu0 0
        %896 = vmatpush1.bf16.msra.mxu0 0
        %897 = vmatprep.subr.bf16.mxu0 0
        %898 = vmatpush1.bf16.msra.mxu0 0
        %899 = vmatprep.subr.bf16.mxu0 0
        %900 = vmatpush1.bf16.msra.mxu0 0
        %901 = vmatprep.subr.bf16.mxu0 0
        %902 = vmatpush1.bf16.msra.mxu0 0
        %903 = vmatprep.subr.bf16.mxu0 0
        %904 = vmatpush1.bf16.msra.mxu0 0
        %905 = vmatprep.subr.bf16.mxu0 0
        %906 = vmatpush1.bf16.msra.mxu0 0
        %907 = vmatprep.subr.bf16.mxu0 0
        %908 = vmatpush1.bf16.msra.mxu0 0
        %909 = vmatprep.subr.bf16.mxu0 0
        %910 = vmatpush1.bf16.msra.mxu0 0
        %911 = vmatprep.subr.bf16.mxu0 0
        %912 = vmatpush1.bf16.msra.mxu0 0
        %913 = vmatprep.subr.bf16.mxu0 0
        %914 = vmatpush1.bf16.msra.mxu0 0
        %915 = vmatprep.subr.bf16.mxu0 0
        %916 = vmatpush1.bf16.msra.mxu0 0
        %917 = vmatprep.subr.bf16.mxu0 0
        %918 = vmatpush1.bf16.msra.mxu0 0
        %919 = vmatprep.subr.bf16.mxu0 0
        %920 = vmatpush1.bf16.msra.mxu0 0
        %921 = vmatprep.subr.bf16.mxu0 0
        %922 = vmatpush1.bf16.msra.mxu0 0
        %923 = vmatprep.subr.bf16.mxu0 0
        %924 = vmatpush1.bf16.msra.mxu0 0
        %925 = vmatprep.mubr.bf16.mxu0 0
        %926 = vmatmul.mubr.bf16.gmra.mrb[0].mxu0 %v888
        %v927 = vpop.f32.mrb[0].mxu0
        %v928 = vadd.f32 0.0, %v927
        %v929 = vpop.f32.mrb[0].mxu0
        %v930 = vpop.f32.mrb[0].mxu0
        %v931 = vpop.f32.mrb[0].mxu0
        %932 = vdwg.mxu0
        %v933 = vadd.f32 %v771, %v928
        %934 = vrot.lane.b32.xlu0 %v457, 104
        %v935 = vpop.permute.xlu0 %934
        %936 = vrot.lane.b32.xlu0 %v417, 104
        %v937 = vpop.permute.xlu0 %936
        %v939 = vsel %vm462, %v935, 0
        %v942 = vsel %vm462, %v937, 0
        %944 = vmatprep.subr.bf16.mxu0 0
        %945 = vmatpush1.bf16.xpose.msra.mxu0 %v942
        %946 = vmatprep.subr.bf16.mxu0 0
        %947 = vmatpush1.bf16.xpose.msra.mxu0 0
        %948 = vmatprep.subr.bf16.mxu0 0
        %949 = vmatpush1.bf16.xpose.msra.mxu0 0
        %950 = vmatprep.subr.bf16.mxu0 0
        %951 = vmatpush1.bf16.xpose.msra.mxu0 0
        %952 = vmatprep.subr.bf16.mxu0 0
        %953 = vmatpush1.bf16.xpose.msra.mxu0 0
        %954 = vmatprep.subr.bf16.mxu0 0
        %955 = vmatpush1.bf16.xpose.msra.mxu0 0
        %956 = vmatprep.subr.bf16.mxu0 0
        %957 = vmatpush1.bf16.xpose.msra.mxu0 0
        %958 = vmatprep.subr.bf16.mxu0 0
        %959 = vmatpush1.bf16.xpose.msra.mxu0 0
        %960 = vmatprep.subr.bf16.mxu0 0
        %961 = vmatpush1.bf16.xpose.msra.mxu0 0
        %962 = vmatprep.subr.bf16.mxu0 0
        %963 = vmatpush1.bf16.xpose.msra.mxu0 0
        %964 = vmatprep.subr.bf16.mxu0 0
        %965 = vmatpush1.bf16.xpose.msra.mxu0 0
        %966 = vmatprep.subr.bf16.mxu0 0
        %967 = vmatpush1.bf16.xpose.msra.mxu0 0
        %968 = vmatprep.subr.bf16.mxu0 0
        %969 = vmatpush1.bf16.xpose.msra.mxu0 0
        %970 = vmatprep.subr.bf16.mxu0 0
        %971 = vmatpush1.bf16.xpose.msra.mxu0 0
        %972 = vmatprep.subr.bf16.mxu0 0
        %973 = vmatpush1.bf16.xpose.msra.mxu0 0
        %974 = vmatprep.subr.bf16.mxu0 0
        %975 = vmatpush1.bf16.xpose.msra.mxu0 0
        %976 = vmatprep.mubr.bf16.mxu0 0
        %977 = vmatmul.mubr.bf16.gmra.mrb[0].mxu0 %v939
        %v978 = vpop.f32.mrb[0].mxu0
        %v979 = vadd.f32 0.0, %v978
        %v980 = vpop.f32.mrb[0].mxu0
        %v981 = vpop.f32.mrb[0].mxu0
        %v982 = vpop.f32.mrb[0].mxu0
        %983 = vdwg.mxu0
        %v984 = vsel %vm462, %v979, -inf
        %985 = vmax.xlane.f32.xlu0 %v984
        %v986 = vpop.xlane.xlu0 %985
        %v987 = vsub.f32 %v979, %v986
        %v988 = vmul.f32 %v987, 1.442695
        %v989 = vpow.pop %v988
        %v990 = vsel %vm462, %v989, 0.0
        %991 = vadd.xlane.f32.xlu0 %v990
        %v992 = vpop.xlane.xlu0 %991
        %v993 = vrcp.pop %v992
        %v994 = vmul.f32 %v989, %v993
        %v995 = vpack.c.bf16 %v994, %v994
        %996 = vrot.lane.b32.xlu0 %v417, 72
        %v997 = vpop.permute.xlu0 %996
        %v999 = vsel %vm462, %v995, 0
        %v1002 = vsel %vm527, %v997, 0
        %1004 = vmatprep.subr.bf16.mxu0 0
        %1005 = vmatpush1.bf16.msra.mxu0 %v1002
        %1006 = vmatprep.subr.bf16.mxu0 0
        %1007 = vmatpush1.bf16.msra.mxu0 0
        %1008 = vmatprep.subr.bf16.mxu0 0
        %1009 = vmatpush1.bf16.msra.mxu0 0
        %1010 = vmatprep.subr.bf16.mxu0 0
        %1011 = vmatpush1.bf16.msra.mxu0 0
        %1012 = vmatprep.subr.bf16.mxu0 0
        %1013 = vmatpush1.bf16.msra.mxu0 0
        %1014 = vmatprep.subr.bf16.mxu0 0
        %1015 = vmatpush1.bf16.msra.mxu0 0
        %1016 = vmatprep.subr.bf16.mxu0 0
        %1017 = vmatpush1.bf16.msra.mxu0 0
        %1018 = vmatprep.subr.bf16.mxu0 0
        %1019 = vmatpush1.bf16.msra.mxu0 0
        %1020 = vmatprep.subr.bf16.mxu0 0
        %1021 = vmatpush1.bf16.msra.mxu0 0
        %1022 = vmatprep.subr.bf16.mxu0 0
        %1023 = vmatpush1.bf16.msra.mxu0 0
        %1024 = vmatprep.subr.bf16.mxu0 0
        %1025 = vmatpush1.bf16.msra.mxu0 0
        %1026 = vmatprep.subr.bf16.mxu0 0
        %1027 = vmatpush1.bf16.msra.mxu0 0
        %1028 = vmatprep.subr.bf16.mxu0 0
        %1029 = vmatpush1.bf16.msra.mxu0 0
        %1030 = vmatprep.subr.bf16.mxu0 0
        %1031 = vmatpush1.bf16.msra.mxu0 0
        %1032 = vmatprep.subr.bf16.mxu0 0
        %1033 = vmatpush1.bf16.msra.mxu0 0
        %1034 = vmatprep.subr.bf16.mxu0 0
        %1035 = vmatpush1.bf16.msra.mxu0 0
        %1036 = vmatprep.mubr.bf16.mxu0 0
        %1037 = vmatmul.mubr.bf16.gmra.mrb[0].mxu0 %v999
        %v1038 = vpop.f32.mrb[0].mxu0
        %v1039 = vadd.f32 0.0, %v1038
        %v1040 = vpop.f32.mrb[0].mxu0
        %v1041 = vpop.f32.mrb[0].mxu0
        %v1042 = vpop.f32.mrb[0].mxu0
        %1043 = vdwg.mxu0
        %v1044 = vpack.c.bf16 %v1039, %v1039
        %v1046 = vsel %vm462, %v1044, 0
        %v1049 = vsel %vm527, %v461, 0
        %1051 = vmatprep.subr.bf16.mxu0 0
        %1052 = vmatpush1.bf16.msra.mxu0 %v1049
        %1053 = vmatprep.subr.bf16.mxu0 0
        %1054 = vmatpush1.bf16.msra.mxu0 0
        %1055 = vmatprep.subr.bf16.mxu0 0
        %1056 = vmatpush1.bf16.msra.mxu0 0
        %1057 = vmatprep.subr.bf16.mxu0 0
        %1058 = vmatpush1.bf16.msra.mxu0 0
        %1059 = vmatprep.subr.bf16.mxu0 0
        %1060 = vmatpush1.bf16.msra.mxu0 0
        %1061 = vmatprep.subr.bf16.mxu0 0
        %1062 = vmatpush1.bf16.msra.mxu0 0
        %1063 = vmatprep.subr.bf16.mxu0 0
        %1064 = vmatpush1.bf16.msra.mxu0 0
        %1065 = vmatprep.subr.bf16.mxu0 0
        %1066 = vmatpush1.bf16.msra.mxu0 0
        %1067 = vmatprep.subr.bf16.mxu0 0
        %1068 = vmatpush1.bf16.msra.mxu0 0
        %1069 = vmatprep.subr.bf16.mxu0 0
        %1070 = vmatpush1.bf16.msra.mxu0 0
        %1071 = vmatprep.subr.bf16.mxu0 0
        %1072 = vmatpush1.bf16.msra.mxu0 0
        %1073 = vmatprep.subr.bf16.mxu0 0
        %1074 = vmatpush1.bf16.msra.mxu0 0
        %1075 = vmatprep.subr.bf16.mxu0 0
        %1076 = vmatpush1.bf16.msra.mxu0 0
        %1077 = vmatprep.subr.bf16.mxu0 0
        %1078 = vmatpush1.bf16.msra.mxu0 0
        %1079 = vmatprep.subr.bf16.mxu0 0
        %1080 = vmatpush1.bf16.msra.mxu0 0
        %1081 = vmatprep.subr.bf16.mxu0 0
        %1082 = vmatpush1.bf16.msra.mxu0 0
        %1083 = vmatprep.mubr.bf16.mxu0 0
        %1084 = vmatmul.mubr.bf16.gmra.mrb[0].mxu0 %v1046
        %v1085 = vpop.f32.mrb[0].mxu0
        %v1086 = vadd.f32 0.0, %v1085
        %v1087 = vpop.f32.mrb[0].mxu0
        %v1088 = vpop.f32.mrb[0].mxu0
        %v1089 = vpop.f32.mrb[0].mxu0
        %1090 = vdwg.mxu0
        %v1091 = vadd.f32 %v933, %v1086
        %v1092 = vld [vmem:[%s7] sm:$0x1]
        %v1094 = vlaneseq
        %v1095 = vshrl.u32 %v1094, 7
        %v1096 = vsub.s32 0, %v1095
        %v1097 = vrot.slane %v1092, %v1096
        %v1099 = vadd.f32 %v1091, %v1097
        %1100 = vst.msk [vmem:[%s337] sm:$0xff] %vm373, %v1099
        %s1101 = sand.u32 %s210, 1
        %s1102 = scalar_lea.sflag [#allocation4], %s1101
        %s1103 = sand.u32 %s210, 1
        %s1104 = smul.addr %s1103, 8
        %s1105 = scalar_lea.vmem [#allocation7], %s1104
        // Predicated region
        $region61: #{tpu_custom_call.1} parent=51 // pred_check
          %p1106 = pneg %p220
        $region62: #{tpu_custom_call.1} parent=51 // pred_check_branch
          %1108 = sbr.rel (%p1106) target = $region64
        $region63: #{tpu_custom_call.1} parent=51 // pred_region
          %s1110 = ssub.s32 128, 128
          %1111 = vsyncadd %s1102, %s1110
          %s1112 = smul.addr %s24, 128
          %s1113 = scalar_lea.hbm %s8, %s1112
          %s1115 = sshll.u32 %s1105, 4
          %s1116 = int_to_ptr.vmem [resolvable:$true] %s1115
          %1118 = dma.vmem_to_hbm [thread:$0]  %s1116, 128, %s1113, %s1102
        $region64: #{tpu_custom_call.1} parent=51 // pred_fallthru
          _
      $region52: #{tpu_custom_call.1} parent=5 // pred_fallthru
        _
      %p1119 = scmp.le.s32.totalorder 2, %s19
      // Predicated region
      $region65: #{tpu_custom_call.1} parent=5 // pred_check
        %p1120 = pneg %p1119
      $region66: #{tpu_custom_call.1} parent=5 // pred_check_branch
        %1122 = sbr.rel (%p1120) target = $region68
      $region67: #{tpu_custom_call.1} parent=5 // pred_region
        %s1123 = ssub.s32 %s19, 2
        // Predicated region
        $region69: #{tpu_custom_call.1} parent=67 // pred_check
          %p1124 = pneg %p226
        $region70: #{tpu_custom_call.1} parent=67 // pred_check_branch
          %1126 = sbr.rel (%p1124) target = $region72
        $region71: #{tpu_custom_call.1} parent=67 // pred_region
          %s1127 = sand.u32 %s211, 1
          %s1128 = scalar_lea.sflag [#allocation4], %s1127
          %s1129 = sand.u32 %s211, 1
          %s1130 = smul.addr %s1129, 8
          %s1131 = scalar_lea.vmem [#allocation7], %s1130
          %1132 = dma.done %s1128, 128
        $region72: #{tpu_custom_call.1} parent=67 // pred_fallthru
          _
      $region68: #{tpu_custom_call.1} parent=5 // pred_fallthru
        _
    $region6: #{tpu_custom_call.1} parent=1 // loop_footer
      %s23 = sadd.s32 1, %s19
    $region7: #{tpu_custom_call.1} parent=1 // loop_footer_branch
      %18 = sbr.rel target = $region3
    $region8: #{tpu_custom_call.1} parent=1 // loop_exit
      _
    %1133 = vsyncpa [#allocation3], 1
    %s1134 = scalar_lea.sflag [#allocation3], 1
    %1135 = vsyncpa %s1134, 1
    %1136 = vsyncpa [#allocation6], 1
    %1137 = vsyncpa [#allocation4], 1
    %s1138 = scalar_lea.sflag [#allocation4], 1
    %1139 = vsyncpa %s1138, 1

// kernel: tpu_custom_call.1
$region0: #{tpu_custom_call.1}
  #allocation0 [shape = 'u32[]', space=smem, size = 0x4, offset = 0x4, fixed_abs, tag = 'smem constant byte address 0x4 - core index']
  #allocation1 [shape = 'u32[144,128]{1,0:T(1,128)}', space=vmem, size = 0x12000, scoped, tag = 'internal scratch']
  %s0 = inlined_call_operand.vmem [shape: f32[2,8,3], index: 0, kind: input, shape index: {}]
  %s1 = inlined_call_operand.vmem [shape: f32[2,8,32], index: 1, kind: input, shape index: {}]
  %s2 = inlined_call_operand.hbm [shape: f32[3,32], index: 2, kind: input, shape index: {}]
  %s3 = inlined_call_operand.vmem [shape: f32[1,32], index: 3, kind: input, shape index: {}]
  %s4 = inlined_call_operand.vmem [shape: bf16[32,64], index: 4, kind: input, shape index: {}]
  %s5 = inlined_call_operand.vmem [shape: f32[1,64], index: 5, kind: input, shape index: {}]
  %s6 = inlined_call_operand.hbm [shape: bf16[32,32], index: 6, kind: input, shape index: {}]
  %s7 = inlined_call_operand.vmem [shape: f32[1,32], index: 7, kind: input, shape index: {}]
  %s8 = inlined_call_operand.hbm [shape: f32[2,8,32], index: 8, kind: output, shape index: {}]
  %s9 = sld [smem:[#allocation0]]
  $region73: #{tpu_custom_call.1} parent=0
    _
  %s11 = ssub.s32 1, %s9
  %s12 = scalar_select 0, %s11, %s9
  $region1: #{tpu_custom_call.1} parent=0
    #allocation2 [shape = 'u8[2048]{0}', space=vmem, size = 0x800, scoped, tag = 'input window, operand 2, single buffered']
    #allocation3 [shape = 's32[2]{0}', space=sflag, size = 0x8, scoped, tag = 'scoped memory for tpu_custom_call.1']
    #allocation4 [shape = 's32[2]{0}', space=sflag, size = 0x8, scoped, tag = 'scoped memory for tpu_custom_call.1']
    #allocation5 [shape = 'u8[8192]{0}', space=vmem, size = 0x2000, scoped, tag = 'input window, operand 6, single buffered']
    #allocation6 [shape = 's32[1]{0}', space=sflag, size = 0x4, scoped, tag = 'scoped memory for tpu_custom_call.1']
    #allocation7 [shape = 'u8[8192]{0}', space=vmem, size = 0x2000, scoped, tag = 'output window, operand 0']
    %13 = vsyncpa [#allocation3], 0
    %14 = vsyncpa [#allocation6], 0
    %15 = vsyncpa [#allocation4], 0
    %s16 = scalar_lea.sflag [#allocation4], 1
    %17 = vsyncpa %s16, 0
    loop: start=0, step=1, limit=4
    $region2: #{tpu_custom_call.1} parent=1 // loop_pre_header
      _
    $region3: #{tpu_custom_call.1} parent=1 // loop_header
      %s19 = sphi 0, %s23
      %p20 = scmp.ge.s32.totalorder %s19, 4
      %s29 = sphi 0, %s31
      %s32 = sphi 0, %s29
      %s33 = sphi 0, %s32
      %s49 = sphi 0, %s33
      %s55 = sphi 0, %s57
      %s58 = sphi 0, %s55
      %s59 = sphi 0, %s58
      %s75 = sphi 0, %s59
      %s79 = sphi 0, %s79
      %s81 = sphi 0, %s79
      %s82 = sphi 0, %s81
      %s96 = sphi 0, %s82
      %s100 = sphi 0, %s100
      %s102 = sphi 0, %s100
      %s103 = sphi 0, %s102
      %s117 = sphi 0, %s103
      %s121 = sphi 0, %s121
      %s123 = sphi 0, %s121
      %s124 = sphi 0, %s123
      %s138 = sphi 0, %s124
      %s142 = sphi 0, %s142
      %s144 = sphi 0, %s142
      %s145 = sphi 0, %s144
      %s159 = sphi 0, %s145
      %s163 = sphi 0, %s163
      %s165 = sphi 0, %s163
      %s166 = sphi 0, %s165
      %s180 = sphi 0, %s166
      %s184 = sphi 0, %s184
      %s186 = sphi 0, %s184
      %s187 = sphi 0, %s186
      %s201 = sphi 0, %s187
      %s207 = sphi 0, %s209
      %s210 = sphi 0, %s207
      %s211 = sphi 0, %s210
      %s227 = sphi 0, %s211
    $region4: #{tpu_custom_call.1} parent=1 // loop_header_branch
      %22 = sbr.rel (%p20) target = $region8
    $region5: #{tpu_custom_call.1} parent=1 // loop_body
      %s24 = ssub.s32 %s19, 1
      %s25 = ssub.s32 %s19, 2
      %s26 = sadd.s32 %s19, 1
      %s27 = ssub.s32 %s19, %s26
      %p28 = scmp.eq.s32.totalorder %s27, 0
      %s30 = sadd.s32 %s29, 1
      %s31 = scalar_select %p28, %s29, %s30
      %p34 = pneg %p28
      %p35 = scmp.eq.s32.totalorder %s19, 1
      %p36 = por %p34, %p35
      %p37 = scmp.ne.s32.totalorder %s29, %s32
      %p38 = scmp.eq.s32.totalorder %s19, 0
      %p39 = por %p37, %p38
      %p40 = scmp.ne.s32.totalorder %s29, %s32
      %p41 = scmp.eq.s32.totalorder %s24, 1
      %p42 = por %p40, %p41
      %p43 = scmp.ne.s32.totalorder %s32, %s33
      %p44 = scmp.eq.s32.totalorder %s24, 0
      %p45 = por %p43, %p44
      %p46 = scmp.ne.s32.totalorder %s32, %s33
      %p47 = scmp.eq.s32.totalorder %s25, 1
      %p48 = por %p46, %p47
      %p50 = scmp.ne.s32.totalorder %s33, %s49
      %p51 = scmp.eq.s32.totalorder %s25, 0
      %p52 = por %p50, %p51
      %s53 = ssub.s32 %s19, %s26
      %p54 = scmp.eq.s32.totalorder %s53, 0
      %s56 = sadd.s32 %s55, 1
      %s57 = scalar_select %p54, %s55, %s56
      %p60 = pneg %p54
      %p61 = scmp.eq.s32.totalorder %s19, 1
      %p62 = por %p60, %p61
      %p63 = scmp.ne.s32.totalorder %s55, %s58
      %p64 = scmp.eq.s32.totalorder %s19, 0
      %p65 = por %p63, %p64
      %p66 = scmp.ne.s32.totalorder %s55, %s58
      %p67 = scmp.eq.s32.totalorder %s24, 1
      %p68 = por %p66, %p67
      %p69 = scmp.ne.s32.totalorder %s58, %s59
      %p70 = scmp.eq.s32.totalorder %s24, 0
      %p71 = por %p69, %p70
      %p72 = scmp.ne.s32.totalorder %s58, %s59
      %p73 = scmp.eq.s32.totalorder %s25, 1
      %p74 = por %p72, %p73
      %p76 = scmp.ne.s32.totalorder %s59, %s75
      %p77 = scmp.eq.s32.totalorder %s25, 0
      %p78 = por %p76, %p77
      %s80 = sadd.s32 %s79, 1
      %p83 = scmp.eq.s32.totalorder %s19, 1
      %p84 = scmp.ne.s32.totalorder %s79, %s81
      %p85 = scmp.eq.s32.totalorder %s19, 0
      %p86 = por %p84, %p85
      %p87 = scmp.ne.s32.totalorder %s79, %s81
      %p88 = scmp.eq.s32.totalorder %s24, 1
      %p89 = por %p87, %p88
      %p90 = scmp.ne.s32.totalorder %s81, %s82
      %p91 = scmp.eq.s32.totalorder %s24, 0
      %p92 = por %p90, %p91
      %p93 = scmp.ne.s32.totalorder %s81, %s82
      %p94 = scmp.eq.s32.totalorder %s25, 1
      %p95 = por %p93, %p94
      %p97 = scmp.ne.s32.totalorder %s82, %s96
      %p98 = scmp.eq.s32.totalorder %s25, 0
      %p99 = por %p97, %p98
      %s101 = sadd.s32 %s100, 1
      %p104 = scmp.eq.s32.totalorder %s19, 1
      %p105 = scmp.ne.s32.totalorder %s100, %s102
      %p106 = scmp.eq.s32.totalorder %s19, 0
      %p107 = por %p105, %p106
      %p108 = scmp.ne.s32.totalorder %s100, %s102
      %p109 = scmp.eq.s32.totalorder %s24, 1
      %p110 = por %p108, %p109
      %p111 = scmp.ne.s32.totalorder %s102, %s103
      %p112 = scmp.eq.s32.totalorder %s24, 0
      %p113 = por %p111, %p112
      %p114 = scmp.ne.s32.totalorder %s102, %s103
      %p115 = scmp.eq.s32.totalorder %s25, 1
      %p116 = por %p114, %p115
      %p118 = scmp.ne.s32.totalorder %s103, %s117
      %p119 = scmp.eq.s32.totalorder %s25, 0
      %p120 = por %p118, %p119
      %s122 = sadd.s32 %s121, 1
      %p125 = scmp.eq.s32.totalorder %s19, 1
      %p126 = scmp.ne.s32.totalorder %s121, %s123
      %p127 = scmp.eq.s32.totalorder %s19, 0
      %p128 = por %p126, %p127
      %p129 = scmp.ne.s32.totalorder %s121, %s123
      %p130 = scmp.eq.s32.totalorder %s24, 1
      %p131 = por %p129, %p130
      %p132 = scmp.ne.s32.totalorder %s123, %s124
      %p133 = scmp.eq.s32.totalorder %s24, 0
      %p134 = por %p132, %p133
      %p135 = scmp.ne.s32.totalorder %s123, %s124
      %p136 = scmp.eq.s32.totalorder %s25, 1
      %p137 = por %p135, %p136
      %p139 = scmp.ne.s32.totalorder %s124, %s138
      %p140 = scmp.eq.s32.totalorder %s25, 0
      %p141 = por %p139, %p140
      %s143 = sadd.s32 %s142, 1
      %p146 = scmp.eq.s32.totalorder %s19, 1
      %p147 = scmp.ne.s32.totalorder %s142, %s144
      %p148 = scmp.eq.s32.totalorder %s19, 0
      %p149 = por %p147, %p148
      %p150 = scmp.ne.s32.totalorder %s142, %s144
      %p151 = scmp.eq.s32.totalorder %s24, 1
      %p152 = por %p150, %p151
      %p153 = scmp.ne.s32.totalorder %s144, %s145
      %p154 = scmp.eq.s32.totalorder %s24, 0
      %p155 = por %p153, %p154
      %p156 = scmp.ne.s32.totalorder %s144, %s145
      %p157 = scmp.eq.s32.totalorder %s25, 1
      %p158 = por %p156, %p157
      %p160 = scmp.ne.s32.totalorder %s145, %s159
      %p161 = scmp.eq.s32.totalorder %s25, 0
      %p162 = por %p160, %p161
      %s164 = sadd.s32 %s163, 1
      %p167 = scmp.eq.s32.totalorder %s19, 1
      %p168 = scmp.ne.s32.totalorder %s163, %s165
      %p169 = scmp.eq.s32.totalorder %s19, 0
      %p170 = por %p168, %p169
      %p171 = scmp.ne.s32.totalorder %s163, %s165
      %p172 = scmp.eq.s32.totalorder %s24, 1
      %p173 = por %p171, %p172
      %p174 = scmp.ne.s32.totalorder %s165, %s166
      %p175 = scmp.eq.s32.totalorder %s24, 0
      %p176 = por %p174, %p175
      %p177 = scmp.ne.s32.totalorder %s165, %s166
      %p178 = scmp.eq.s32.totalorder %s25, 1
      %p179 = por %p177, %p178
      %p181 = scmp.ne.s32.totalorder %s166, %s180
      %p182 = scmp.eq.s32.totalorder %s25, 0
      %p183 = por %p181, %p182
      %s185 = sadd.s32 %s184, 1
      %p188 = scmp.eq.s32.totalorder %s19, 1
      %p189 = scmp.ne.s32.totalorder %s184, %s186
      %p190 = scmp.eq.s32.totalorder %s19, 0
      %p191 = por %p189, %p190
      %p192 = scmp.ne.s32.totalorder %s184, %s186
      %p193 = scmp.eq.s32.totalorder %s24, 1
      %p194 = por %p192, %p193
      %p195 = scmp.ne.s32.totalorder %s186, %s187
      %p196 = scmp.eq.s32.totalorder %s24, 0
      %p197 = por %p195, %p196
      %p198 = scmp.ne.s32.totalorder %s186, %s187
      %p199 = scmp.eq.s32.totalorder %s25, 1
      %p200 = por %p198, %p199
      %p202 = scmp.ne.s32.totalorder %s187, %s201
      %p203 = scmp.eq.s32.totalorder %s25, 0
      %p204 = por %p202, %p203
      %s205 = ssub.s32 %s19, %s26
      %p206 = scmp.eq.s32.totalorder %s205, 0
      %s208 = sadd.s32 %s207, 1
      %s209 = scalar_select %p206, %s207, %s208
      %p212 = pneg %p206
      %p213 = scmp.eq.s32.totalorder %s19, 1
      %p214 = por %p212, %p213
      %p215 = scmp.ne.s32.totalorder %s207, %s210
      %p216 = scmp.eq.s32.totalorder %s19, 0
      %p217 = por %p215, %p216
      %p218 = scmp.ne.s32.totalorder %s207, %s210
      %p219 = scmp.eq.s32.totalorder %s24, 1
      %p220 = por %p218, %p219
      %p221 = scmp.ne.s32.totalorder %s210, %s211
      %p222 = scmp.eq.s32.totalorder %s24, 0
      %p223 = por %p221, %p222
      %p224 = scmp.ne.s32.totalorder %s210, %s211
      %p225 = scmp.eq.s32.totalorder %s25, 1
      %p226 = por %p224, %p225
      %p228 = scmp.ne.s32.totalorder %s211, %s227
      %p229 = scmp.eq.s32.totalorder %s25, 0
      %p230 = por %p228, %p229
      %p231 = scmp.le.s32.totalorder 1, %s19
      %p232 = scmp.lt.s32.totalorder %s19, 3
      %p233 = pnand %p231, %p232
      %p234 = pneg %p233
      // Predicated region
      $region9: #{tpu_custom_call.1} parent=5 // pred_check
        _
      $region10: #{tpu_custom_call.1} parent=5 // pred_check_branch
        %236 = sbr.rel (%p233) target = $region12
      $region11: #{tpu_custom_call.1} parent=5 // pred_region
        %s237 = ssub.s32 %s19, 1
        // Predicated region
        $region13: #{tpu_custom_call.1} parent=11 // pred_check
          %p238 = pneg %p92
        $region14: #{tpu_custom_call.1} parent=11 // pred_check_branch
          %240 = sbr.rel (%p238) target = $region16
        $region15: #{tpu_custom_call.1} parent=11 // pred_region
          %s242 = ssub.s32 64, 64
          %243 = vsyncadd [#allocation3], %s242
          %s245 = sshll.u32 [#allocation2], 4
          %s246 = int_to_ptr.vmem [resolvable:$true] %s245
          %248 = dma.hbm_to_vmem [thread:$0]  %s2, 64, %s246, [#allocation3]
        $region16: #{tpu_custom_call.1} parent=11 // pred_fallthru
          _
        // Predicated region
        $region17: #{tpu_custom_call.1} parent=11 // pred_check
          %p249 = pneg %p113
        $region18: #{tpu_custom_call.1} parent=11 // pred_check_branch
          %251 = sbr.rel (%p249) target = $region20
        $region19: #{tpu_custom_call.1} parent=11 // pred_region
          _
        $region20: #{tpu_custom_call.1} parent=11 // pred_fallthru
          _
        // Predicated region
        $region21: #{tpu_custom_call.1} parent=11 // pred_check
          %p252 = pneg %p134
        $region22: #{tpu_custom_call.1} parent=11 // pred_check_branch
          %254 = sbr.rel (%p252) target = $region24
        $region23: #{tpu_custom_call.1} parent=11 // pred_region
          _
        $region24: #{tpu_custom_call.1} parent=11 // pred_fallthru
          _
        // Predicated region
        $region25: #{tpu_custom_call.1} parent=11 // pred_check
          %p255 = pneg %p155
        $region26: #{tpu_custom_call.1} parent=11 // pred_check_branch
          %257 = sbr.rel (%p255) target = $region28
        $region27: #{tpu_custom_call.1} parent=11 // pred_region
          _
        $region28: #{tpu_custom_call.1} parent=11 // pred_fallthru
          _
        // Predicated region
        $region29: #{tpu_custom_call.1} parent=11 // pred_check
          %p258 = pneg %p176
        $region30: #{tpu_custom_call.1} parent=11 // pred_check_branch
          %260 = sbr.rel (%p258) target = $region32
        $region31: #{tpu_custom_call.1} parent=11 // pred_region
          %s262 = ssub.s32 256, 256
          %263 = vsyncadd [#allocation6], %s262
          %s264 = sshll.u32 [#allocation5], 4
          %s265 = int_to_ptr.vmem [resolvable:$true] %s264
          %270 = dma.hbm_to_vmem [thread:$0]  %s6, 256, %s265, [#allocation6], 64, 64, 4
        $region32: #{tpu_custom_call.1} parent=11 // pred_fallthru
          _
        // Predicated region
        $region33: #{tpu_custom_call.1} parent=11 // pred_check
          %p271 = pneg %p197
        $region34: #{tpu_custom_call.1} parent=11 // pred_check_branch
          %273 = sbr.rel (%p271) target = $region36
        $region35: #{tpu_custom_call.1} parent=11 // pred_region
          _
        $region36: #{tpu_custom_call.1} parent=11 // pred_fallthru
          _
      $region12: #{tpu_custom_call.1} parent=5 // pred_fallthru
        _
      %p274 = scmp.lt.s32.totalorder %s19, 2
      // Predicated region
      $region37: #{tpu_custom_call.1} parent=5 // pred_check
        %p275 = pneg %p274
      $region38: #{tpu_custom_call.1} parent=5 // pred_check_branch
        %277 = sbr.rel (%p275) target = $region40
      $region39: #{tpu_custom_call.1} parent=5 // pred_region
        // Predicated region
        $region41: #{tpu_custom_call.1} parent=39 // pred_check
          %p278 = pneg %p39
        $region42: #{tpu_custom_call.1} parent=39 // pred_check_branch
          %280 = sbr.rel (%p278) target = $region44
        $region43: #{tpu_custom_call.1} parent=39 // pred_region
          %p281 = scmp.lt.s32.totalorder %s19, 1
          %s282 = scalar_select %p281, %s19, 1
          %s283 = smul.addr %s282, 8
          %s284 = scalar_lea.vmem %s0, %s283
        $region44: #{tpu_custom_call.1} parent=39 // pred_fallthru
          _
        // Predicated region
        $region45: #{tpu_custom_call.1} parent=39 // pred_check
          %p285 = pneg %p65
        $region46: #{tpu_custom_call.1} parent=39 // pred_check_branch
          %287 = sbr.rel (%p285) target = $region48
        $region47: #{tpu_custom_call.1} parent=39 // pred_region
          %p288 = scmp.lt.s32.totalorder %s19, 1
          %s289 = scalar_select %p288, %s19, 1
          %s290 = smul.addr %s289, 8
          %s291 = scalar_lea.vmem %s1, %s290
        $region48: #{tpu_custom_call.1} parent=39 // pred_fallthru
          _
      $region40: #{tpu_custom_call.1} parent=5 // pred_fallthru
        _
      %p292 = scmp.le.s32.totalorder 1, %s19
      %p293 = scmp.lt.s32.totalorder %s19, 3
      %p294 = pnand %p292, %p293
      %p295 = pneg %p294
      // Predicated region
      $region49: #{tpu_custom_call.1} parent=5 // pred_check
        _
      $region50: #{tpu_custom_call.1} parent=5 // pred_check_branch
        %297 = sbr.rel (%p294) target = $region52
      $region51: #{tpu_custom_call.1} parent=5 // pred_region
        %s298 = ssub.s32 %s19, 1
        // Predicated region
        $region53: #{tpu_custom_call.1} parent=51 // pred_check
          %p299 = pneg %p92
        $region54: #{tpu_custom_call.1} parent=51 // pred_check_branch
          %301 = sbr.rel (%p299) target = $region56
        $region55: #{tpu_custom_call.1} parent=51 // pred_region
          %302 = dma.done [#allocation3], 64
        $region56: #{tpu_custom_call.1} parent=51 // pred_fallthru
          _
        // Predicated region
        $region57: #{tpu_custom_call.1} parent=51 // pred_check
          %p303 = pneg %p176
        $region58: #{tpu_custom_call.1} parent=51 // pred_check_branch
          %305 = sbr.rel (%p303) target = $region60
        $region59: #{tpu_custom_call.1} parent=51 // pred_region
          %306 = dma.done [#allocation6], 256
        $region60: #{tpu_custom_call.1} parent=51 // pred_fallthru
          _
        %p307 = scmp.lt.s32.totalorder %s24, 1
        %s308 = scalar_select %p307, %s24, 1
        %s309 = smul.addr %s308, 8
        %s310 = scalar_lea.vmem %s0, %s309
        %p311 = pneg %p45
        %p312 = pneg %p42
        %p313 = scmp.lt.s32.totalorder %s24, 1
        %s314 = scalar_select %p313, %s24, 1
        %s315 = smul.addr %s314, 8
        %s316 = scalar_lea.vmem %s1, %s315
        %p317 = pneg %p71
        %p318 = pneg %p68
        %p319 = pneg %p92
        %p320 = pneg %p89
        %p321 = pneg %p113
        %p322 = pneg %p110
        %p323 = pneg %p134
        %p324 = pneg %p131
        %p325 = pneg %p155
        %p326 = pneg %p152
        %p327 = pneg %p176
        %p328 = pneg %p173
        %p329 = pneg %p197
        %p330 = pneg %p194
        %p331 = pneg %p223
        %p332 = pneg %p220
        %s333 = sand.u32 %s210, 1
        %s334 = scalar_lea.sflag [#allocation4], %s333
        %s335 = sand.u32 %s210, 1
        %s336 = smul.addr %s335, 8
        %s337 = scalar_lea.vmem [#allocation7], %s336
        %p338 = scmp.lt.s32.totalorder %s24, 1
        %s339 = scalar_select %p338, %s24, 1
        %s340 = smul.addr %s339, 8
        %s341 = scalar_lea.vmem %s0, %s340
        %p342 = scmp.lt.s32.totalorder %s24, 1
        %s343 = scalar_select %p342, %s24, 1
        %s344 = smul.addr %s343, 8
        %s345 = scalar_lea.vmem %s1, %s344
        %v347 = vld [vmem:[%s345] sm:$0xff]
        %v348 = vld [vmem:[%s341] sm:$0xff]
        %v349 = vpack.c.bf16 %v347, %v347
        %v350 = vld [vmem:[%s4] sm:$0xf]
        %v351 = vld [vmem:[%s4 + $0x4] sm:$0xf]
        %v352 = vld [vmem:[%s4 + $0x8] sm:$0xf]
        %v353 = vld [vmem:[%s4 + $0xc] sm:$0xf]
        %v354 = vld [vmem:[%s5] sm:$0x1]
        %v356 = vlaneseq
        %v357 = vshrl.u32 %v356, 7
        %v358 = vsub.s32 0, %v357
        %v359 = vrot.slane %v354, %v358
        %v365 = vunpack.c.l.b16 %v350
        %v366 = vunpack.c.l.b16 %v351
        %v367 = vunpack.c.l.b16 %v352
        %v368 = vunpack.c.l.b16 %v353
        %v369 = vpack.c.b16 %v366, %v365
        %v370 = vpack.c.b16 %v368, %v367
        %vm373 = vcmask 261120
        %v375 = vsel %vm373, %v349, 0
        %377 = vmatprep.subr.bf16.mxu0 0
        %378 = vmatpush1.bf16.msra.mxu0 %v369
        %379 = vmatprep.subr.bf16.mxu0 0
        %380 = vmatpush1.bf16.msra.mxu0 %v370
        %381 = vmatprep.subr.bf16.mxu0 0
        %382 = vmatpush1.bf16.msra.mxu0 0
        %383 = vmatprep.subr.bf16.mxu0 0
        %384 = vmatpush1.bf16.msra.mxu0 0
        %385 = vmatprep.subr.bf16.mxu0 0
        %386 = vmatpush1.bf16.msra.mxu0 0
        %387 = vmatprep.subr.bf16.mxu0 0
        %388 = vmatpush1.bf16.msra.mxu0 0
        %389 = vmatprep.subr.bf16.mxu0 0
        %390 = vmatpush1.bf16.msra.mxu0 0
        %391 = vmatprep.subr.bf16.mxu0 0
        %392 = vmatpush1.bf16.msra.mxu0 0
        %393 = vmatprep.subr.bf16.mxu0 0
        %394 = vmatpush1.bf16.msra.mxu0 0
        %395 = vmatprep.subr.bf16.mxu0 0
        %396 = vmatpush1.bf16.msra.mxu0 0
        %397 = vmatprep.subr.bf16.mxu0 0
        %398 = vmatpush1.bf16.msra.mxu0 0
        %399 = vmatprep.subr.bf16.mxu0 0
        %400 = vmatpush1.bf16.msra.mxu0 0
        %401 = vmatprep.subr.bf16.mxu0 0
        %402 = vmatpush1.bf16.msra.mxu0 0
        %403 = vmatprep.subr.bf16.mxu0 0
        %404 = vmatpush1.bf16.msra.mxu0 0
        %405 = vmatprep.subr.bf16.mxu0 0
        %406 = vmatpush1.bf16.msra.mxu0 0
        %407 = vmatprep.subr.bf16.mxu0 0
        %408 = vmatpush1.bf16.msra.mxu0 0
        %409 = vmatprep.mubr.bf16.mxu0 0
        %410 = vmatmul.mubr.bf16.gmra.mrb[0].mxu0 %v375
        %v411 = vpop.f32.mrb[0].mxu0
        %v412 = vadd.f32 %v359, %v411
        %v413 = vpop.f32.mrb[0].mxu0
        %v414 = vpop.f32.mrb[0].mxu0
        %v415 = vpop.f32.mrb[0].mxu0
        %416 = vdwg.mxu0
        %v417 = vpack.c.bf16 %v412, %v412
        %v418 = vld [vmem:[#allocation2] sm:$0x7]
        %420 = vset.pattern.permute.xlu0 0
        %421 = vperm.xlu0 %420, %v348
        %v422 = vpop.permute.xlu0 %421
        %v424 = vlaneseq
        %v425 = vshrl.u32 %v424, 7
        %v426 = vsub.s32 0, %v425
        %v427 = vrot.slane %v418, %v426
        %v428 = vmul.f32 %v422, %v427
        %429 = vset.pattern.permute.xlu0 1
        %430 = vperm.xlu0 %429, %v348
        %v431 = vpop.permute.xlu0 %430
        %v433 = vlaneseq
        %v434 = vshrl.u32 %v433, 7
        %v435 = vsub.s32 1, %v434
        %v436 = vrot.slane %v418, %v435
        %v437 = vmul.f32 %v431, %v436
        %v438 = vadd.f32 %v428, %v437
        %439 = vset.pattern.permute.xlu0 2
        %440 = vperm.xlu0 %439, %v348
        %v441 = vpop.permute.xlu0 %440
        %v443 = vlaneseq
        %v444 = vshrl.u32 %v443, 7
        %v445 = vsub.s32 2, %v444
        %v446 = vrot.slane %v418, %v445
        %v447 = vmul.f32 %v441, %v446
        %v448 = vadd.f32 %v438, %v447
        %v449 = vld [vmem:[%s3] sm:$0x1]
        %v451 = vlaneseq
        %v452 = vshrl.u32 %v451, 7
        %v453 = vsub.s32 0, %v452
        %v454 = vrot.slane %v449, %v453
        %v456 = vadd.f32 %v448, %v454
        %v457 = vpack.c.bf16 %v456, %v456
        %v458 = vld [vmem:[#allocation5] sm:$0xf]
        %v459 = vld [vmem:[#allocation5 + $0x4] sm:$0xf]
        %v460 = vld [vmem:[#allocation5 + $0x8] sm:$0xf]
        %v461 = vld [vmem:[#allocation5 + $0xc] sm:$0xf]
        %vm462 = vcmask 64512
        %v464 = vsel %vm462, %v457, 0
        %v467 = vsel %vm462, %v417, 0
        %469 = vmatprep.subr.bf16.mxu0 0
        %470 = vmatpush1.bf16.xpose.msra.mxu0 %v467
        %471 = vmatprep.subr.bf16.mxu0 0
        %472 = vmatpush1.bf16.xpose.msra.mxu0 0
        %473 = vmatprep.subr.bf16.mxu0 0
        %474 = vmatpush1.bf16.xpose.msra.mxu0 0
        %475 = vmatprep.subr.bf16.mxu0 0
        %476 = vmatpush1.bf16.xpose.msra.mxu0 0
        %477 = vmatprep.subr.bf16.mxu0 0
        %478 = vmatpush1.bf16.xpose.msra.mxu0 0
        %479 = vmatprep.subr.bf16.mxu0 0
        %480 = vmatpush1.bf16.xpose.msra.mxu0 0
        %481 = vmatprep.subr.bf16.mxu0 0
        %482 = vmatpush1.bf16.xpose.msra.mxu0 0
        %483 = vmatprep.subr.bf16.mxu0 0
        %484 = vmatpush1.bf16.xpose.msra.mxu0 0
        %485 = vmatprep.subr.bf16.mxu0 0
        %486 = vmatpush1.bf16.xpose.msra.mxu0 0
        %487 = vmatprep.subr.bf16.mxu0 0
        %488 = vmatpush1.bf16.xpose.msra.mxu0 0
        %489 = vmatprep.subr.bf16.mxu0 0
        %490 = vmatpush1.bf16.xpose.msra.mxu0 0
        %491 = vmatprep.subr.bf16.mxu0 0
        %492 = vmatpush1.bf16.xpose.msra.mxu0 0
        %493 = vmatprep.subr.bf16.mxu0 0
        %494 = vmatpush1.bf16.xpose.msra.mxu0 0
        %495 = vmatprep.subr.bf16.mxu0 0
        %496 = vmatpush1.bf16.xpose.msra.mxu0 0
        %497 = vmatprep.subr.bf16.mxu0 0
        %498 = vmatpush1.bf16.xpose.msra.mxu0 0
        %499 = vmatprep.subr.bf16.mxu0 0
        %500 = vmatpush1.bf16.xpose.msra.mxu0 0
        %501 = vmatprep.mubr.bf16.mxu0 0
        %502 = vmatmul.mubr.bf16.gmra.mrb[0].mxu0 %v464
        %v503 = vpop.f32.mrb[0].mxu0
        %v504 = vadd.f32 0.0, %v503
        %v505 = vpop.f32.mrb[0].mxu0
        %v506 = vpop.f32.mrb[0].mxu0
        %v507 = vpop.f32.mrb[0].mxu0
        %508 = vdwg.mxu0
        %v509 = vsel %vm462, %v504, -inf
        %510 = vmax.xlane.f32.xlu0 %v509
        %v511 = vpop.xlane.xlu0 %510
        %v512 = vsub.f32 %v504, %v511
        %v513 = vmul.f32 %v512, 1.442695
        %v514 = vpow.pop %v513
        %v515 = vsel %vm462, %v514, 0.0
        %516 = vadd.xlane.f32.xlu0 %v515
        %v517 = vpop.xlane.xlu0 %516
        %v518 = vrcp.pop %v517
        %v519 = vmul.f32 %v514, %v518
        %v520 = vpack.c.bf16 %v519, %v519
        %522 = vrot.lane.b32.xlu0 %v417, 96
        %v523 = vpop.permute.xlu0 %522
        %v525 = vsel %vm462, %v520, 0
        %vm527 = vcmask 1043456
        %v529 = vsel %vm527, %v523, 0
        %531 = vmatprep.subr.bf16.mxu0 0
        %532 = vmatpush1.bf16.msra.mxu0 %v529
        %533 = vmatprep.subr.bf16.mxu0 0
        %534 = vmatpush1.bf16.msra.mxu0 0
        %535 = vmatprep.subr.bf16.mxu0 0
        %536 = vmatpush1.bf16.msra.mxu0 0
        %537 = vmatprep.subr.bf16.mxu0 0
        %538 = vmatpush1.bf16.msra.mxu0 0
        %539 = vmatprep.subr.bf16.mxu0 0
        %540 = vmatpush1.bf16.msra.mxu0 0
        %541 = vmatprep.subr.bf16.mxu0 0
        %542 = vmatpush1.bf16.msra.mxu0 0
        %543 = vmatprep.subr.bf16.mxu0 0
        %544 = vmatpush1.bf16.msra.mxu0 0
        %545 = vmatprep.subr.bf16.mxu0 0
        %546 = vmatpush1.bf16.msra.mxu0 0
        %547 = vmatprep.subr.bf16.mxu0 0
        %548 = vmatpush1.bf16.msra.mxu0 0
        %549 = vmatprep.subr.bf16.mxu0 0
        %550 = vmatpush1.bf16.msra.mxu0 0
        %551 = vmatprep.subr.bf16.mxu0 0
        %552 = vmatpush1.bf16.msra.mxu0 0
        %553 = vmatprep.subr.bf16.mxu0 0
        %554 = vmatpush1.bf16.msra.mxu0 0
        %555 = vmatprep.subr.bf16.mxu0 0
        %556 = vmatpush1.bf16.msra.mxu0 0
        %557 = vmatprep.subr.bf16.mxu0 0
        %558 = vmatpush1.bf16.msra.mxu0 0
        %559 = vmatprep.subr.bf16.mxu0 0
        %560 = vmatpush1.bf16.msra.mxu0 0
        %561 = vmatprep.subr.bf16.mxu0 0
        %562 = vmatpush1.bf16.msra.mxu0 0
        %563 = vmatprep.mubr.bf16.mxu0 0
        %564 = vmatmul.mubr.bf16.gmra.mrb[0].mxu0 %v525
        %v565 = vpop.f32.mrb[0].mxu0
        %v566 = vadd.f32 0.0, %v565
        %v567 = vpop.f32.mrb[0].mxu0
        %v568 = vpop.f32.mrb[0].mxu0
        %v569 = vpop.f32.mrb[0].mxu0
        %570 = vdwg.mxu0
        %v571 = vpack.c.bf16 %v566, %v566
        %573 = vrot.lane.b32.xlu0 %v457, 120
        %v574 = vpop.permute.xlu0 %573
        %575 = vrot.lane.b32.xlu0 %v417, 120
        %v576 = vpop.permute.xlu0 %575
        %v578 = vsel %vm462, %v574, 0
        %v581 = vsel %vm462, %v576, 0
        %583 = vmatprep.subr.bf16.mxu0 0
        %584 = vmatpush1.bf16.xpose.msra.mxu0 %v581
        %585 = vmatprep.subr.bf16.mxu0 0
        %586 = vmatpush1.bf16.xpose.msra.mxu0 0
        %587 = vmatprep.subr.bf16.mxu0 0
        %588 = vmatpush1.bf16.xpose.msra.mxu0 0
        %589 = vmatprep.subr.bf16.mxu0 0
        %590 = vmatpush1.bf16.xpose.msra.mxu0 0
        %591 = vmatprep.subr.bf16.mxu0 0
        %592 = vmatpush1.bf16.xpose.msra.mxu0 0
        %593 = vmatprep.subr.bf16.mxu0 0
        %594 = vmatpush1.bf16.xpose.msra.mxu0 0
        %595 = vmatprep.subr.bf16.mxu0 0
        %596 = vmatpush1.bf16.xpose.msra.mxu0 0
        %597 = vmatprep.subr.bf16.mxu0 0
        %598 = vmatpush1.bf16.xpose.msra.mxu0 0
        %599 = vmatprep.subr.bf16.mxu0 0
        %600 = vmatpush1.bf16.xpose.msra.mxu0 0
        %601 = vmatprep.subr.bf16.mxu0 0
        %602 = vmatpush1.bf16.xpose.msra.mxu0 0
        %603 = vmatprep.subr.bf16.mxu0 0
        %604 = vmatpush1.bf16.xpose.msra.mxu0 0
        %605 = vmatprep.subr.bf16.mxu0 0
        %606 = vmatpush1.bf16.xpose.msra.mxu0 0
        %607 = vmatprep.subr.bf16.mxu0 0
        %608 = vmatpush1.bf16.xpose.msra.mxu0 0
        %609 = vmatprep.subr.bf16.mxu0 0
        %610 = vmatpush1.bf16.xpose.msra.mxu0 0
        %611 = vmatprep.subr.bf16.mxu0 0
        %612 = vmatpush1.bf16.xpose.msra.mxu0 0
        %613 = vmatprep.subr.bf16.mxu0 0
        %614 = vmatpush1.bf16.xpose.msra.mxu0 0
        %615 = vmatprep.mubr.bf16.mxu0 0
        %616 = vmatmul.mubr.bf16.gmra.mrb[0].mxu0 %v578
        %v617 = vpop.f32.mrb[0].mxu0
        %v618 = vadd.f32 0.0, %v617
        %v619 = vpop.f32.mrb[0].mxu0
        %v620 = vpop.f32.mrb[0].mxu0
        %v621 = vpop.f32.mrb[0].mxu0
        %622 = vdwg.mxu0
        %v623 = vsel %vm462, %v618, -inf
        %624 = vmax.xlane.f32.xlu0 %v623
        %v625 = vpop.xlane.xlu0 %624
        %v626 = vsub.f32 %v618, %v625
        %v627 = vmul.f32 %v626, 1.442695
        %v628 = vpow.pop %v627
        %v629 = vsel %vm462, %v628, 0.0
        %630 = vadd.xlane.f32.xlu0 %v629
        %v631 = vpop.xlane.xlu0 %630
        %v632 = vrcp.pop %v631
        %v633 = vmul.f32 %v628, %v632
        %v634 = vpack.c.bf16 %v633, %v633
        %635 = vrot.lane.b32.xlu0 %v417, 88
        %v636 = vpop.permute.xlu0 %635
        %v638 = vsel %vm462, %v634, 0
        %v641 = vsel %vm527, %v636, 0
        %643 = vmatprep.subr.bf16.mxu0 0
        %644 = vmatpush1.bf16.msra.mxu0 %v641
        %645 = vmatprep.subr.bf16.mxu0 0
        %646 = vmatpush1.bf16.msra.mxu0 0
        %647 = vmatprep.subr.bf16.mxu0 0
        %648 = vmatpush1.bf16.msra.mxu0 0
        %649 = vmatprep.subr.bf16.mxu0 0
        %650 = vmatpush1.bf16.msra.mxu0 0
        %651 = vmatprep.subr.bf16.mxu0 0
        %652 = vmatpush1.bf16.msra.mxu0 0
        %653 = vmatprep.subr.bf16.mxu0 0
        %654 = vmatpush1.bf16.msra.mxu0 0
        %655 = vmatprep.subr.bf16.mxu0 0
        %656 = vmatpush1.bf16.msra.mxu0 0
        %657 = vmatprep.subr.bf16.mxu0 0
        %658 = vmatpush1.bf16.msra.mxu0 0
        %659 = vmatprep.subr.bf16.mxu0 0
        %660 = vmatpush1.bf16.msra.mxu0 0
        %661 = vmatprep.subr.bf16.mxu0 0
        %662 = vmatpush1.bf16.msra.mxu0 0
        %663 = vmatprep.subr.bf16.mxu0 0
        %664 = vmatpush1.bf16.msra.mxu0 0
        %665 = vmatprep.subr.bf16.mxu0 0
        %666 = vmatpush1.bf16.msra.mxu0 0
        %667 = vmatprep.subr.bf16.mxu0 0
        %668 = vmatpush1.bf16.msra.mxu0 0
        %669 = vmatprep.subr.bf16.mxu0 0
        %670 = vmatpush1.bf16.msra.mxu0 0
        %671 = vmatprep.subr.bf16.mxu0 0
        %672 = vmatpush1.bf16.msra.mxu0 0
        %673 = vmatprep.subr.bf16.mxu0 0
        %674 = vmatpush1.bf16.msra.mxu0 0
        %675 = vmatprep.mubr.bf16.mxu0 0
        %676 = vmatmul.mubr.bf16.gmra.mrb[0].mxu0 %v638
        %v677 = vpop.f32.mrb[0].mxu0
        %v678 = vadd.f32 0.0, %v677
        %v679 = vpop.f32.mrb[0].mxu0
        %v680 = vpop.f32.mrb[0].mxu0
        %v681 = vpop.f32.mrb[0].mxu0
        %682 = vdwg.mxu0
        %v683 = vpack.c.bf16 %v678, %v678
        %v685 = vsel %vm462, %v683, 0
        %v688 = vsel %vm527, %v459, 0
        %690 = vmatprep.subr.bf16.mxu0 0
        %691 = vmatpush1.bf16.msra.mxu0 %v688
        %692 = vmatprep.subr.bf16.mxu0 0
        %693 = vmatpush1.bf16.msra.mxu0 0
        %694 = vmatprep.subr.bf16.mxu0 0
        %695 = vmatpush1.bf16.msra.mxu0 0
        %696 = vmatprep.subr.bf16.mxu0 0
        %697 = vmatpush1.bf16.msra.mxu0 0
        %698 = vmatprep.subr.bf16.mxu0 0
        %699 = vmatpush1.bf16.msra.mxu0 0
        %700 = vmatprep.subr.bf16.mxu0 0
        %701 = vmatpush1.bf16.msra.mxu0 0
        %702 = vmatprep.subr.bf16.mxu0 0
        %703 = vmatpush1.bf16.msra.mxu0 0
        %704 = vmatprep.subr.bf16.mxu0 0
        %705 = vmatpush1.bf16.msra.mxu0 0
        %706 = vmatprep.subr.bf16.mxu0 0
        %707 = vmatpush1.bf16.msra.mxu0 0
        %708 = vmatprep.subr.bf16.mxu0 0
        %709 = vmatpush1.bf16.msra.mxu0 0
        %710 = vmatprep.subr.bf16.mxu0 0
        %711 = vmatpush1.bf16.msra.mxu0 0
        %712 = vmatprep.subr.bf16.mxu0 0
        %713 = vmatpush1.bf16.msra.mxu0 0
        %714 = vmatprep.subr.bf16.mxu0 0
        %715 = vmatpush1.bf16.msra.mxu0 0
        %716 = vmatprep.subr.bf16.mxu0 0
        %717 = vmatpush1.bf16.msra.mxu0 0
        %718 = vmatprep.subr.bf16.mxu0 0
        %719 = vmatpush1.bf16.msra.mxu0 0
        %720 = vmatprep.subr.bf16.mxu0 0
        %721 = vmatpush1.bf16.msra.mxu0 0
        %722 = vmatprep.mubr.bf16.mxu0 0
        %723 = vmatmul.mubr.bf16.gmra.mrb[0].mxu0 %v685
        %v724 = vpop.f32.mrb[0].mxu0
        %v725 = vadd.f32 0.0, %v724
        %v726 = vpop.f32.mrb[0].mxu0
        %v727 = vpop.f32.mrb[0].mxu0
        %v728 = vpop.f32.mrb[0].mxu0
        %729 = vdwg.mxu0
        %v731 = vsel %vm462, %v571, 0
        %v734 = vsel %vm527, %v458, 0
        %736 = vmatprep.subr.bf16.mxu0 0
        %737 = vmatpush1.bf16.msra.mxu0 %v734
        %738 = vmatprep.subr.bf16.mxu0 0
        %739 = vmatpush1.bf16.msra.mxu0 0
        %740 = vmatprep.subr.bf16.mxu0 0
        %741 = vmatpush1.bf16.msra.mxu0 0
        %742 = vmatprep.subr.bf16.mxu0 0
        %743 = vmatpush1.bf16.msra.mxu0 0
        %744 = vmatprep.subr.bf16.mxu0 0
        %745 = vmatpush1.bf16.msra.mxu0 0
        %746 = vmatprep.subr.bf16.mxu0 0
        %747 = vmatpush1.bf16.msra.mxu0 0
        %748 = vmatprep.subr.bf16.mxu0 0
        %749 = vmatpush1.bf16.msra.mxu0 0
        %750 = vmatprep.subr.bf16.mxu0 0
        %751 = vmatpush1.bf16.msra.mxu0 0
        %752 = vmatprep.subr.bf16.mxu0 0
        %753 = vmatpush1.bf16.msra.mxu0 0
        %754 = vmatprep.subr.bf16.mxu0 0
        %755 = vmatpush1.bf16.msra.mxu0 0
        %756 = vmatprep.subr.bf16.mxu0 0
        %757 = vmatpush1.bf16.msra.mxu0 0
        %758 = vmatprep.subr.bf16.mxu0 0
        %759 = vmatpush1.bf16.msra.mxu0 0
        %760 = vmatprep.subr.bf16.mxu0 0
        %761 = vmatpush1.bf16.msra.mxu0 0
        %762 = vmatprep.subr.bf16.mxu0 0
        %763 = vmatpush1.bf16.msra.mxu0 0
        %764 = vmatprep.subr.bf16.mxu0 0
        %765 = vmatpush1.bf16.msra.mxu0 0
        %766 = vmatprep.subr.bf16.mxu0 0
        %767 = vmatpush1.bf16.msra.mxu0 0
        %768 = vmatprep.mubr.bf16.mxu0 0
        %769 = vmatmul.mubr.bf16.gmra.mrb[0].mxu0 %v731
        %v770 = vpop.f32.mrb[0].mxu0
        %v771 = vadd.f32 %v725, %v770
        %v772 = vpop.f32.mrb[0].mxu0
        %v773 = vpop.f32.mrb[0].mxu0
        %v774 = vpop.f32.mrb[0].mxu0
        %775 = vdwg.mxu0
        %776 = vrot.lane.b32.xlu0 %v457, 112
        %v777 = vpop.permute.xlu0 %776
        %778 = vrot.lane.b32.xlu0 %v417, 112
        %v779 = vpop.permute.xlu0 %778
        %v781 = vsel %vm462, %v777, 0
        %v784 = vsel %vm462, %v779, 0
        %786 = vmatprep.subr.bf16.mxu0 0
        %787 = vmatpush1.bf16.xpose.msra.mxu0 %v784
        %788 = vmatprep.subr.bf16.mxu0 0
        %789 = vmatpush1.bf16.xpose.msra.mxu0 0
        %790 = vmatprep.subr.bf16.mxu0 0
        %791 = vmatpush1.bf16.xpose.msra.mxu0 0
        %792 = vmatprep.subr.bf16.mxu0 0
        %793 = vmatpush1.bf16.xpose.msra.mxu0 0
        %794 = vmatprep.subr.bf16.mxu0 0
        %795 = vmatpush1.bf16.xpose.msra.mxu0 0
        %796 = vmatprep.subr.bf16.mxu0 0
        %797 = vmatpush1.bf16.xpose.msra.mxu0 0
        %798 = vmatprep.subr.bf16.mxu0 0
        %799 = vmatpush1.bf16.xpose.msra.mxu0 0
        %800 = vmatprep.subr.bf16.mxu0 0
        %801 = vmatpush1.bf16.xpose.msra.mxu0 0
        %802 = vmatprep.subr.bf16.mxu0 0
        %803 = vmatpush1.bf16.xpose.msra.mxu0 0
        %804 = vmatprep.subr.bf16.mxu0 0
        %805 = vmatpush1.bf16.xpose.msra.mxu0 0
        %806 = vmatprep.subr.bf16.mxu0 0
        %807 = vmatpush1.bf16.xpose.msra.mxu0 0
        %808 = vmatprep.subr.bf16.mxu0 0
        %809 = vmatpush1.bf16.xpose.msra.mxu0 0
        %810 = vmatprep.subr.bf16.mxu0 0
        %811 = vmatpush1.bf16.xpose.msra.mxu0 0
        %812 = vmatprep.subr.bf16.mxu0 0
        %813 = vmatpush1.bf16.xpose.msra.mxu0 0
        %814 = vmatprep.subr.bf16.mxu0 0
        %815 = vmatpush1.bf16.xpose.msra.mxu0 0
        %816 = vmatprep.subr.bf16.mxu0 0
        %817 = vmatpush1.bf16.xpose.msra.mxu0 0
        %818 = vmatprep.mubr.bf16.mxu0 0
        %819 = vmatmul.mubr.bf16.gmra.mrb[0].mxu0 %v781
        %v820 = vpop.f32.mrb[0].mxu0
        %v821 = vadd.f32 0.0, %v820
        %v822 = vpop.f32.mrb[0].mxu0
        %v823 = vpop.f32.mrb[0].mxu0
        %v824 = vpop.f32.mrb[0].mxu0
        %825 = vdwg.mxu0
        %v826 = vsel %vm462, %v821, -inf
        %827 = vmax.xlane.f32.xlu0 %v826
        %v828 = vpop.xlane.xlu0 %827
        %v829 = vsub.f32 %v821, %v828
        %v830 = vmul.f32 %v829, 1.442695
        %v831 = vpow.pop %v830
        %v832 = vsel %vm462, %v831, 0.0
        %833 = vadd.xlane.f32.xlu0 %v832
        %v834 = vpop.xlane.xlu0 %833
        %v835 = vrcp.pop %v834
        %v836 = vmul.f32 %v831, %v835
        %v837 = vpack.c.bf16 %v836, %v836
        %838 = vrot.lane.b32.xlu0 %v417, 80
        %v839 = vpop.permute.xlu0 %838
        %v841 = vsel %vm462, %v837, 0
        %v844 = vsel %vm527, %v839, 0
        %846 = vmatprep.subr.bf16.mxu0 0
        %847 = vmatpush1.bf16.msra.mxu0 %v844
        %848 = vmatprep.subr.bf16.mxu0 0
        %849 = vmatpush1.bf16.msra.mxu0 0
        %850 = vmatprep.subr.bf16.mxu0 0
        %851 = vmatpush1.bf16.msra.mxu0 0
        %852 = vmatprep.subr.bf16.mxu0 0
        %853 = vmatpush1.bf16.msra.mxu0 0
        %854 = vmatprep.subr.bf16.mxu0 0
        %855 = vmatpush1.bf16.msra.mxu0 0
        %856 = vmatprep.subr.bf16.mxu0 0
        %857 = vmatpush1.bf16.msra.mxu0 0
        %858 = vmatprep.subr.bf16.mxu0 0
        %859 = vmatpush1.bf16.msra.mxu0 0
        %860 = vmatprep.subr.bf16.mxu0 0
        %861 = vmatpush1.bf16.msra.mxu0 0
        %862 = vmatprep.subr.bf16.mxu0 0
        %863 = vmatpush1.bf16.msra.mxu0 0
        %864 = vmatprep.subr.bf16.mxu0 0
        %865 = vmatpush1.bf16.msra.mxu0 0
        %866 = vmatprep.subr.bf16.mxu0 0
        %867 = vmatpush1.bf16.msra.mxu0 0
        %868 = vmatprep.subr.bf16.mxu0 0
        %869 = vmatpush1.bf16.msra.mxu0 0
        %870 = vmatprep.subr.bf16.mxu0 0
        %871 = vmatpush1.bf16.msra.mxu0 0
        %872 = vmatprep.subr.bf16.mxu0 0
        %873 = vmatpush1.bf16.msra.mxu0 0
        %874 = vmatprep.subr.bf16.mxu0 0
        %875 = vmatpush1.bf16.msra.mxu0 0
        %876 = vmatprep.subr.bf16.mxu0 0
        %877 = vmatpush1.bf16.msra.mxu0 0
        %878 = vmatprep.mubr.bf16.mxu0 0
        %879 = vmatmul.mubr.bf16.gmra.mrb[0].mxu0 %v841
        %v880 = vpop.f32.mrb[0].mxu0
        %v881 = vadd.f32 0.0, %v880
        %v882 = vpop.f32.mrb[0].mxu0
        %v883 = vpop.f32.mrb[0].mxu0
        %v884 = vpop.f32.mrb[0].mxu0
        %885 = vdwg.mxu0
        %v886 = vpack.c.bf16 %v881, %v881
        %v888 = vsel %vm462, %v886, 0
        %v891 = vsel %vm527, %v460, 0
        %893 = vmatprep.subr.bf16.mxu0 0
        %894 = vmatpush1.bf16.msra.mxu0 %v891
        %895 = vmatprep.subr.bf16.mxu0 0
        %896 = vmatpush1.bf16.msra.mxu0 0
        %897 = vmatprep.subr.bf16.mxu0 0
        %898 = vmatpush1.bf16.msra.mxu0 0
        %899 = vmatprep.subr.bf16.mxu0 0
        %900 = vmatpush1.bf16.msra.mxu0 0
        %901 = vmatprep.subr.bf16.mxu0 0
        %902 = vmatpush1.bf16.msra.mxu0 0
        %903 = vmatprep.subr.bf16.mxu0 0
        %904 = vmatpush1.bf16.msra.mxu0 0
        %905 = vmatprep.subr.bf16.mxu0 0
        %906 = vmatpush1.bf16.msra.mxu0 0
        %907 = vmatprep.subr.bf16.mxu0 0
        %908 = vmatpush1.bf16.msra.mxu0 0
        %909 = vmatprep.subr.bf16.mxu0 0
        %910 = vmatpush1.bf16.msra.mxu0 0
        %911 = vmatprep.subr.bf16.mxu0 0
        %912 = vmatpush1.bf16.msra.mxu0 0
        %913 = vmatprep.subr.bf16.mxu0 0
        %914 = vmatpush1.bf16.msra.mxu0 0
        %915 = vmatprep.subr.bf16.mxu0 0
        %916 = vmatpush1.bf16.msra.mxu0 0
        %917 = vmatprep.subr.bf16.mxu0 0
        %918 = vmatpush1.bf16.msra.mxu0 0
        %919 = vmatprep.subr.bf16.mxu0 0
        %920 = vmatpush1.bf16.msra.mxu0 0
        %921 = vmatprep.subr.bf16.mxu0 0
        %922 = vmatpush1.bf16.msra.mxu0 0
        %923 = vmatprep.subr.bf16.mxu0 0
        %924 = vmatpush1.bf16.msra.mxu0 0
        %925 = vmatprep.mubr.bf16.mxu0 0
        %926 = vmatmul.mubr.bf16.gmra.mrb[0].mxu0 %v888
        %v927 = vpop.f32.mrb[0].mxu0
        %v928 = vadd.f32 0.0, %v927
        %v929 = vpop.f32.mrb[0].mxu0
        %v930 = vpop.f32.mrb[0].mxu0
        %v931 = vpop.f32.mrb[0].mxu0
        %932 = vdwg.mxu0
        %v933 = vadd.f32 %v771, %v928
        %934 = vrot.lane.b32.xlu0 %v457, 104
        %v935 = vpop.permute.xlu0 %934
        %936 = vrot.lane.b32.xlu0 %v417, 104
        %v937 = vpop.permute.xlu0 %936
        %v939 = vsel %vm462, %v935, 0
        %v942 = vsel %vm462, %v937, 0
        %944 = vmatprep.subr.bf16.mxu0 0
        %945 = vmatpush1.bf16.xpose.msra.mxu0 %v942
        %946 = vmatprep.subr.bf16.mxu0 0
        %947 = vmatpush1.bf16.xpose.msra.mxu0 0
        %948 = vmatprep.subr.bf16.mxu0 0
        %949 = vmatpush1.bf16.xpose.msra.mxu0 0
        %950 = vmatprep.subr.bf16.mxu0 0
        %951 = vmatpush1.bf16.xpose.msra.mxu0 0
        %952 = vmatprep.subr.bf16.mxu0 0
        %953 = vmatpush1.bf16.xpose.msra.mxu0 0
        %954 = vmatprep.subr.bf16.mxu0 0
        %955 = vmatpush1.bf16.xpose.msra.mxu0 0
        %956 = vmatprep.subr.bf16.mxu0 0
        %957 = vmatpush1.bf16.xpose.msra.mxu0 0
        %958 = vmatprep.subr.bf16.mxu0 0
        %959 = vmatpush1.bf16.xpose.msra.mxu0 0
        %960 = vmatprep.subr.bf16.mxu0 0
        %961 = vmatpush1.bf16.xpose.msra.mxu0 0
        %962 = vmatprep.subr.bf16.mxu0 0
        %963 = vmatpush1.bf16.xpose.msra.mxu0 0
        %964 = vmatprep.subr.bf16.mxu0 0
        %965 = vmatpush1.bf16.xpose.msra.mxu0 0
        %966 = vmatprep.subr.bf16.mxu0 0
        %967 = vmatpush1.bf16.xpose.msra.mxu0 0
        %968 = vmatprep.subr.bf16.mxu0 0
        %969 = vmatpush1.bf16.xpose.msra.mxu0 0
        %970 = vmatprep.subr.bf16.mxu0 0
        %971 = vmatpush1.bf16.xpose.msra.mxu0 0
        %972 = vmatprep.subr.bf16.mxu0 0
        %973 = vmatpush1.bf16.xpose.msra.mxu0 0
        %974 = vmatprep.subr.bf16.mxu0 0
        %975 = vmatpush1.bf16.xpose.msra.mxu0 0
        %976 = vmatprep.mubr.bf16.mxu0 0
        %977 = vmatmul.mubr.bf16.gmra.mrb[0].mxu0 %v939
        %v978 = vpop.f32.mrb[0].mxu0
        %v979 = vadd.f32 0.0, %v978
        %v980 = vpop.f32.mrb[0].mxu0
        %v981 = vpop.f32.mrb[0].mxu0
        %v982 = vpop.f32.mrb[0].mxu0
        %983 = vdwg.mxu0
        %v984 = vsel %vm462, %v979, -inf
        %985 = vmax.xlane.f32.xlu0 %v984
        %v986 = vpop.xlane.xlu0 %985
        %v987 = vsub.f32 %v979, %v986
        %v988 = vmul.f32 %v987, 1.442695
        %v989 = vpow.pop %v988
        %v990 = vsel %vm462, %v989, 0.0
        %991 = vadd.xlane.f32.xlu0 %v990
        %v992 = vpop.xlane.xlu0 %991
        %v993 = vrcp.pop %v992
        %v994 = vmul.f32 %v989, %v993
        %v995 = vpack.c.bf16 %v994, %v994
        %996 = vrot.lane.b32.xlu0 %v417, 72
        %v997 = vpop.permute.xlu0 %996
        %v999 = vsel %vm462, %v995, 0
        %v1002 = vsel %vm527, %v997, 0
        %1004 = vmatprep.subr.bf16.mxu0 0
        %1005 = vmatpush1.bf16.msra.mxu0 %v1002
        %1006 = vmatprep.subr.bf16.mxu0 0
        %1007 = vmatpush1.bf16.msra.mxu0 0
        %1008 = vmatprep.subr.bf16.mxu0 0
        %1009 = vmatpush1.bf16.msra.mxu0 0
        %1010 = vmatprep.subr.bf16.mxu0 0
        %1011 = vmatpush1.bf16.msra.mxu0 0
        %1012 = vmatprep.subr.bf16.mxu0 0
        %1013 = vmatpush1.bf16.msra.mxu0 0
        %1014 = vmatprep.subr.bf16.mxu0 0
        %1015 = vmatpush1.bf16.msra.mxu0 0
        %1016 = vmatprep.subr.bf16.mxu0 0
        %1017 = vmatpush1.bf16.msra.mxu0 0
        %1018 = vmatprep.subr.bf16.mxu0 0
        %1019 = vmatpush1.bf16.msra.mxu0 0
        %1020 = vmatprep.subr.bf16.mxu0 0
        %1021 = vmatpush1.bf16.msra.mxu0 0
        %1022 = vmatprep.subr.bf16.mxu0 0
        %1023 = vmatpush1.bf16.msra.mxu0 0
        %1024 = vmatprep.subr.bf16.mxu0 0
        %1025 = vmatpush1.bf16.msra.mxu0 0
        %1026 = vmatprep.subr.bf16.mxu0 0
        %1027 = vmatpush1.bf16.msra.mxu0 0
        %1028 = vmatprep.subr.bf16.mxu0 0
        %1029 = vmatpush1.bf16.msra.mxu0 0
        %1030 = vmatprep.subr.bf16.mxu0 0
        %1031 = vmatpush1.bf16.msra.mxu0 0
        %1032 = vmatprep.subr.bf16.mxu0 0
        %1033 = vmatpush1.bf16.msra.mxu0 0
        %1034 = vmatprep.subr.bf16.mxu0 0
        %1035 = vmatpush1.bf16.msra.mxu0 0
        %1036 = vmatprep.mubr.bf16.mxu0 0
        %1037 = vmatmul.mubr.bf16.gmra.mrb[0].mxu0 %v999
        %v1038 = vpop.f32.mrb[0].mxu0
        %v1039 = vadd.f32 0.0, %v1038
        %v1040 = vpop.f32.mrb[0].mxu0
        %v1041 = vpop.f32.mrb[0].mxu0
        %v1042 = vpop.f32.mrb[0].mxu0
        %1043 = vdwg.mxu0
        %v1044 = vpack.c.bf16 %v1039, %v1039
        %v1046 = vsel %vm462, %v1044, 0
        %v1049 = vsel %vm527, %v461, 0
        %1051 = vmatprep.subr.bf16.mxu0 0
        %1052 = vmatpush1.bf16.msra.mxu0 %v1049
        %1053 = vmatprep.subr.bf16.mxu0 0
        %1054 = vmatpush1.bf16.msra.mxu0 0
        %1055 = vmatprep.subr.bf16.mxu0 0
        %1056 = vmatpush1.bf16.msra.mxu0 0
        %1057 = vmatprep.subr.bf16.mxu0 0
        %1058 = vmatpush1.bf16.msra.mxu0 0
        %1059 = vmatprep.subr.bf16.mxu0 0
        %1060 = vmatpush1.bf16.msra.mxu0 0
        %1061 = vmatprep.subr.bf16.mxu0 0
        %1062 = vmatpush1.bf16.msra.mxu0 0
        %1063 = vmatprep.subr.bf16.mxu0 0
        %1064 = vmatpush1.bf16.msra.mxu0 0
        %1065 = vmatprep.subr.bf16.mxu0 0
        %1066 = vmatpush1.bf16.msra.mxu0 0
        %1067 = vmatprep.subr.bf16.mxu0 0
        %1068 = vmatpush1.bf16.msra.mxu0 0
        %1069 = vmatprep.subr.bf16.mxu0 0
        %1070 = vmatpush1.bf16.msra.mxu0 0
        %1071 = vmatprep.subr.bf16.mxu0 0
        %1072 = vmatpush1.bf16.msra.mxu0 0
        %1073 = vmatprep.subr.bf16.mxu0 0
        %1074 = vmatpush1.bf16.msra.mxu0 0
        %1075 = vmatprep.subr.bf16.mxu0 0
        %1076 = vmatpush1.bf16.msra.mxu0 0
        %1077 = vmatprep.subr.bf16.mxu0 0
        %1078 = vmatpush1.bf16.msra.mxu0 0
        %1079 = vmatprep.subr.bf16.mxu0 0
        %1080 = vmatpush1.bf16.msra.mxu0 0
        %1081 = vmatprep.subr.bf16.mxu0 0
        %1082 = vmatpush1.bf16.msra.mxu0 0
        %1083 = vmatprep.mubr.bf16.mxu0 0
        %1084 = vmatmul.mubr.bf16.gmra.mrb[0].mxu0 %v1046
        %v1085 = vpop.f32.mrb[0].mxu0
        %v1086 = vadd.f32 0.0, %v1085
        %v1087 = vpop.f32.mrb[0].mxu0
        %v1088 = vpop.f32.mrb[0].mxu0
        %v1089 = vpop.f32.mrb[0].mxu0
        %1090 = vdwg.mxu0
        %v1091 = vadd.f32 %v933, %v1086
        %v1092 = vld [vmem:[%s7] sm:$0x1]
        %v1094 = vlaneseq
        %v1095 = vshrl.u32 %v1094, 7
        %v1096 = vsub.s32 0, %v1095
        %v1097 = vrot.slane %v1092, %v1096
        %v1099 = vadd.f32 %v1091, %v1097
        %1100 = vst.msk [vmem:[%s337] sm:$0xff] %vm373, %v1099
        %s1101 = sand.u32 %s210, 1
        %s1102 = scalar_lea.sflag [#allocation4], %s1101
        %s1103 = sand.u32 %s210, 1
        %s1104 = smul.addr %s1103, 8
        %s1105 = scalar_lea.vmem [#allocation7], %s1104
        // Predicated region
        $region61: #{tpu_custom_call.1} parent=51 // pred_check
          %p1106 = pneg %p220
        $region62: #{tpu_custom_call.1} parent=51 // pred_check_branch
          %1108 = sbr.rel (%p1106) target = $region64
        $region63: #{tpu_custom_call.1} parent=51 // pred_region
          %s1110 = ssub.s32 128, 128
          %1111 = vsyncadd %s1102, %s1110
          %s1112 = smul.addr %s24, 128
          %s1113 = scalar_lea.hbm %s8, %s1112
          %s1115 = sshll.u32 %s1105, 4
          %s1116 = int_to_ptr.vmem [resolvable:$true] %s1115
          %1118 = dma.vmem_to_hbm [thread:$0]  %s1116, 128, %s1113, %s1102
        $region64: #{tpu_custom_call.1} parent=51 // pred_fallthru
          _
      $region52: #{tpu_custom_call.1} parent=5 // pred_fallthru
        _
      %p1119 = scmp.le.s32.totalorder 2, %s19
      // Predicated region
      $region65: #{tpu_custom_call.1} parent=5 // pred_check
        %p1120 = pneg %p1119
      $region66: #{tpu_custom_call.1} parent=5 // pred_check_branch
        %1122 = sbr.rel (%p1120) target = $region68
      $region67: #{tpu_custom_call.1} parent=5 // pred_region
        %s1123 = ssub.s32 %s19, 2
        // Predicated region
        $region69: #{tpu_custom_call.1} parent=67 // pred_check
          %p1124 = pneg %p226
        $region70: #{tpu_custom_call.1} parent=67 // pred_check_branch
          %1126 = sbr.rel (%p1124) target = $region72
        $region71: #{tpu_custom_call.1} parent=67 // pred_region
          %s1127 = sand.u32 %s211, 1
          %s1128 = scalar_lea.sflag [#allocation4], %s1127
          %s1129 = sand.u32 %s211, 1
          %s1130 = smul.addr %s1129, 8
          %s1131 = scalar_lea.vmem [#allocation7], %s1130
          %1132 = dma.done %s1128, 128
        $region72: #{tpu_custom_call.1} parent=67 // pred_fallthru
          _
      $region68: #{tpu_custom_call.1} parent=5 // pred_fallthru
        _
    $region6: #{tpu_custom_call.1} parent=1 // loop_footer
      %s23 = sadd.s32 1, %s19
    $region7: #{tpu_custom_call.1} parent=1 // loop_footer_branch
      %18 = sbr.rel target = $region3
    $region8: #{tpu_custom_call.1} parent=1 // loop_exit
      _
    %1133 = vsyncpa [#allocation3], 1
    %s1134 = scalar_lea.sflag [#allocation3], 1
    %1135 = vsyncpa %s1134, 1
    %1136 = vsyncpa [#allocation6], 1
    %1137 = vsyncpa [#allocation4], 1
    %s1138 = scalar_lea.sflag [#allocation4], 1
    %1139 = vsyncpa %s1138, 1

</llo_original>
